<compile_context>
chip_gen: v7x
topology: tpu7x:2x2x1
jax: 0.10.0
libtpu: 0.0.40
codegen_flags: <defaults>
</compile_context>

<pallas_src>
import functools

import jax
import jax.numpy as jnp
from jax import lax
from jax.experimental import pallas as pl
from jax.experimental.pallas import tpu as pltpu

CHANNELS = 62       # fixed by the PyTorch module
CHANNELS_PAD = 64   # padded to a sublane multiple: in-kernel reshapes are free


def _sogc_kernel(x_ref, w_ref, bnb_ref, gcb_ref, o_ref, *, topk, fout):
    """One grid step processes a (BB, CHANNELS_PAD, Fin) batch tile."""
    bsz, cp, fin = x_ref.shape
    g = w_ref.shape[1]

    # Fused projection  y = x @ [Wg | Wb]  as a single weight-stationary matmul
    # with M = BB*64.  The reshape only collapses leading dims and CHANNELS_PAD
    # is a multiple of 8, so it is layout-preserving (no repack).
    x = x_ref[...].astype(jnp.float32)                       # (BB, 64, Fin)
    w = w_ref[...]                                           # (Fin, Fout+Fbn)
    y = jnp.dot(x.reshape(bsz * cp, fin), w,
                preferred_element_type=jnp.float32).reshape(bsz, cp, g)
    h = y[..., :fout]                                        # (BB, 64, Fout)
    xa = jnp.tanh(y[..., fout:] + bnb_ref[...])              # (BB, 64, Fbn)

    # Self-similarity adjacency + numerically stable row softmax.
    logits = jnp.einsum("bcg,bdg->bcd", xa, xa,
                        preferred_element_type=jnp.float32)  # (BB, 64, 64)
    col = lax.broadcasted_iota(jnp.int32, logits.shape, 2)
    row = lax.broadcasted_iota(jnp.int32, logits.shape, 1)
    # Padded channel columns must never contribute to softmax / top-k.
    logits = jnp.where(col >= CHANNELS, -1e30, logits)
    logits = logits - jnp.max(logits, axis=-1, keepdims=True)
    e = jnp.exp(logits)
    adj = e * pl.reciprocal(jnp.sum(e, axis=-1, keepdims=True), approx=True)

    # Top-k per row (iterative argmax; topk is a small static int).  Selected
    # entries are marked with -inf in `work`; tie-break on lowest column index
    # to match lax.top_k / torch.topk.  Padded columns hold 0 => never selected.
    work = adj
    for _ in range(topk):
        rmax = jnp.max(work, axis=-1, keepdims=True)
        cand = jnp.where(work == rmax, col, cp)        # first occurrence wins
        sel = col == jnp.min(cand, axis=-1, keepdims=True)
        work = jnp.where(sel, -jnp.inf, work)
    # Softmax values are strictly positive, so -inf uniquely marks selections.
    adj = jnp.where(work == -jnp.inf, adj, 0.0)

    # DenseGCNConv: self-loops (diag := 1) + symmetric degree normalization
    # folded into the feature matrix:  D^-1/2 A D^-1/2 h == dinv * (A @ (dinv*h)).
    adj = jnp.where(row == col, 1.0, adj)
    deg = jnp.maximum(jnp.sum(adj, axis=-1, keepdims=True), 1.0)
    dinv = lax.rsqrt(deg)
    out = dinv * jnp.einsum("bcd,bdo->bco", adj, dinv * h,
                            preferred_element_type=jnp.float32) + gcb_ref[...]
    o_ref[...] = jnp.maximum(out, 0.0).astype(o_ref.dtype)


def sogc_forward(x, wb, bb, wg, bg, *, topk, block_b=64):
    """x: (..., CHANNELS, in_features) -> (B, CHANNELS, out_features)."""
    fin, fbn = wb.shape
    fout = wg.shape[1]
    x = x.reshape(-1, CHANNELS, fin)          # keep original dtype (no up-cast)
    b = x.shape[0]

    # Batch tile: amortize per-grid-step overhead over up to block_b elements.
    bb_tile = max(1, min(block_b, b))
    b_pad = pl.cdiv(b, bb_tile) * bb_tile
    # Pad batch to a tile multiple and channels 62 -> 64 (sublane alignment).
    x = jnp.pad(x, ((0, b_pad - b), (0, CHANNELS_PAD - CHANNELS), (0, 0)))

    # Fuse the two projections into one stationary weight matrix [Wg | Wb].
    w_cat = jnp.concatenate([wg, wb], axis=1).astype(jnp.float32)  # (Fin, Fout+Fbn)
    bn_bias = bb.reshape(1, fbn).astype(jnp.float32)
    gc_bias = bg.reshape(1, fout).astype(jnp.float32)

    kernel = functools.partial(_sogc_kernel, topk=topk, fout=fout)
    out = pl.pallas_call(
        kernel,
        out_shape=jax.ShapeDtypeStruct((b_pad, CHANNELS_PAD, fout), jnp.float32),
        grid_spec=pltpu.PrefetchScalarGridSpec(
            num_scalar_prefetch=0,
            grid=(b_pad // bb_tile,),
            in_specs=[
                pl.BlockSpec((bb_tile, CHANNELS_PAD, fin), lambda i: (i, 0, 0)),
                pl.BlockSpec((fin, fout + fbn), lambda i: (0, 0)),
                pl.BlockSpec((1, fbn), lambda i: (0, 0)),
                pl.BlockSpec((1, fout), lambda i: (0, 0)),
            ],
            out_specs=pl.BlockSpec((bb_tile, CHANNELS_PAD, fout),
                                   lambda i: (i, 0, 0)),
        ),
        compiler_params=pltpu.CompilerParams(
            # Independent batch steps.  On v7x, switch this axis to
            # pltpu.CORE_PARALLEL if a trace shows one TensorCore doing all steps.
            dimension_semantics=("parallel",),
            # v5e's 16 MiB scoped-VMEM default is too small for BB=64 tiles of
            # (BB,64,64/128-padded) f32 temporaries; 48 MiB is free headroom on
            # v5e/v6e (128 MiB physical) and stays inside v7x's 64 MiB.
            vmem_limit_bytes=48 * 1024 * 1024,
        ),
    )(x, w_cat, bn_bias, gc_bias)
    return out[:b, :CHANNELS]


def sogc_reference(x, wb, bb, wg, bg, *, topk):
    """Plain-JAX reference mirroring the PyTorch forward."""
    fin = wb.shape[0]
    x = x.reshape(-1, CHANNELS, fin).astype(jnp.float32)
    xa = jnp.tanh(jnp.einsum("bcf,fg->bcg", x, wb) + bb)
    adj = jnp.einsum("bcg,bdg->bcd", xa, xa)
    adj = jax.nn.softmax(adj, axis=2)
    _, idx = lax.top_k(adj, topk)
    amask = (jax.nn.one_hot(idx, CHANNELS, dtype=jnp.float32).sum(axis=2) > 0)
    adj = adj * amask.astype(adj.dtype)
    eye = jnp.eye(CHANNELS, dtype=adj.dtype)
    adj = jnp.where(eye > 0, 1.0, adj)
    deg = jnp.maximum(adj.sum(-1), 1.0)
    dinv = deg ** -0.5
    adj = dinv[..., :, None] * adj * dinv[..., None, :]
    h = jnp.einsum("bcf,fo->bco", x, wg)
    return jax.nn.relu(jnp.einsum("bcd,bdo->bco", adj, h) + bg)


if __name__ == "__main__":
    # Small, module-consistent shapes.
    batch = 2
    in_features = 16
    bn_features = 8
    out_features = 32
    topk = 4

    key = jax.random.PRNGKey(0)
    kx, kwb, kbb, kwg, kbg = jax.random.split(key, 5)

    x = jax.random.normal(kx, (batch, CHANNELS, in_features), dtype=jnp.float32)
    # Deterministic parameter init (uniform, Linear-style fan-in scaling).
    wb = jax.random.uniform(kwb, (in_features, bn_features), jnp.float32,
                            -1.0, 1.0) / jnp.sqrt(in_features)
    bbias = jax.random.uniform(kbb, (bn_features,), jnp.float32,
                               -1.0, 1.0) / jnp.sqrt(in_features)
    wg = jax.random.uniform(kwg, (in_features, out_features), jnp.float32,
                            -1.0, 1.0) / jnp.sqrt(in_features)
    gbias = 0.01 * jax.random.normal(kbg, (out_features,), jnp.float32)

    out = sogc_forward(x, wb, bbias, wg, gbias, topk=topk)
    out = jax.block_until_ready(out)

    ref = sogc_reference(x, wb, bbias, wg, gbias, topk=topk)
    assert out.shape == (batch, CHANNELS, out_features), out.shape
    # Tolerance covers the approximate (EUP) reciprocal in the softmax
    # denominator (a per-row uniform scale; top-k ordering is unaffected).
    err = float(jnp.max(jnp.abs(out - ref)))
    assert err < 2e-3, err

    print("KERNEL_OK")
</pallas_src>

<mosaic_0001>
module attributes {stable_mosaic.version = 11 : i64} {
  func.func @_sogc_kernel(%arg0: i32, %arg1: memref<2x64x16xf32, #tpu.memory_space<vmem>>, %arg2: memref<16x40xf32, #tpu.memory_space<vmem>>, %arg3: memref<1x8xf32, #tpu.memory_space<vmem>>, %arg4: memref<1x32xf32, #tpu.memory_space<vmem>>, %arg5: memref<2x64x32xf32, #tpu.memory_space<vmem>>) attributes {dimension_semantics = [#tpu.dimension_semantics<parallel>], iteration_bounds = array<i64: 1>, scalar_prefetch = 0 : i64, scratch_operands = 0 : i64, tpu.core_type = #tpu.core_type<tc>, window_params = [{transform_indices = @transform_0, window_bounds = array<i64: 2, 64, 16>}, {pipeline_mode = #tpu.pipeline_mode<synchronous>, transform_indices = @transform_1, window_bounds = array<i64: 16, 40>}, {pipeline_mode = #tpu.pipeline_mode<synchronous>, transform_indices = @transform_2, window_bounds = array<i64: 1, 8>}, {pipeline_mode = #tpu.pipeline_mode<synchronous>, transform_indices = @transform_3, window_bounds = array<i64: 1, 32>}, {transform_indices = @transform_4, window_bounds = array<i64: 2, 64, 32>}]} {
    %c0 = arith.constant 0 : index
    %c0_0 = arith.constant 0 : index
    %c0_1 = arith.constant 0 : index
    %0 = vector.load %arg1[%c0, %c0_0, %c0_1] : memref<2x64x16xf32, #tpu.memory_space<vmem>>, vector<2x64x16xf32>
    %c0_2 = arith.constant 0 : index
    %c0_3 = arith.constant 0 : index
    %1 = vector.load %arg2[%c0_2, %c0_3] : memref<16x40xf32, #tpu.memory_space<vmem>>, vector<16x40xf32>
    %2 = vector.shape_cast %0 : vector<2x64x16xf32> to vector<128x16xf32>
    %cst = arith.constant dense<0.000000e+00> : vector<128x40xf32>
    %3 = tpu.matmul %2, %1, %cst {dimension_numbers = #tpu.dot_dimension_numbers<[1], [0], [0], [1], [0, 0, 1, 1], [], []>} : vector<128x16xf32>, vector<16x40xf32>, vector<128x40xf32> -> vector<128x40xf32>
    %4 = vector.shape_cast %3 : vector<128x40xf32> to vector<2x64x40xf32>
    %5 = vector.extract_strided_slice %4 {offsets = [0, 0, 0], sizes = [2, 64, 32], strides = [1, 1, 1]} : vector<2x64x40xf32> to vector<2x64x32xf32>
    %6 = vector.extract_strided_slice %4 {offsets = [0, 0, 32], sizes = [2, 64, 8], strides = [1, 1, 1]} : vector<2x64x40xf32> to vector<2x64x8xf32>
    %c0_4 = arith.constant 0 : index
    %c0_5 = arith.constant 0 : index
    %7 = vector.load %arg3[%c0_4, %c0_5] : memref<1x8xf32, #tpu.memory_space<vmem>>, vector<1x8xf32>
    %8 = vector.shape_cast %7 : vector<1x8xf32> to vector<1x1x8xf32>
    %9 = vector.broadcast %8 : vector<1x1x8xf32> to vector<2x64x8xf32>
    %10 = arith.addf %6, %9 : vector<2x64x8xf32>
    %11 = math.tanh %10 : vector<2x64x8xf32>
    "tpu.trace_start"() <{level = 10 : i32, message = "bcg,bdg->bcd"}> : () -> ()
    %cst_6 = arith.constant dense<0.000000e+00> : vector<2x64x64xf32>
    %12 = tpu.matmul %11, %11, %cst_6 {dimension_numbers = #tpu.dot_dimension_numbers<[2], [2], [1], [1], [0, 0, 0, 1, 1, 1], [0], [0]>} : vector<2x64x8xf32>, vector<2x64x8xf32>, vector<2x64x64xf32> -> vector<2x64x64xf32>
    "tpu.trace_stop"() : () -> ()
    %13 = tpu.iota {dimensions = array<i32: 2>} : vector<2x64x64xi32>
    %14 = tpu.iota {dimensions = array<i32: 1>} : vector<2x64x64xi32>
    %c62_i32 = arith.constant 62 : i32
    %15 = vector.broadcast %c62_i32 : i32 to vector<2x64x64xi32>
    %16 = arith.cmpi sge, %13, %15 : vector<2x64x64xi32>
    %cst_7 = arith.constant -1.000000e+30 : f32
    %17 = vector.broadcast %cst_7 : f32 to vector<2x64x64xf32>
    %18 = arith.select %16, %17, %12 : vector<2x64x64xi1>, vector<2x64x64xf32>
    %cst_8 = arith.constant dense<0xFF800000> : vector<2x64xf32>
    %19 = vector.multi_reduction <maximumf>, %18, %cst_8 [2] : vector<2x64x64xf32> to vector<2x64xf32>
    %20 = vector.shape_cast %19 : vector<2x64xf32> to vector<2x64x1xf32>
    %21 = vector.broadcast %20 : vector<2x64x1xf32> to vector<2x64x64xf32>
    %22 = arith.subf %18, %21 : vector<2x64x64xf32>
    %23 = math.exp %22 : vector<2x64x64xf32>
    %cst_9 = arith.constant dense<0.000000e+00> : vector<2x64xf32>
    %24 = vector.multi_reduction <add>, %23, %cst_9 [2] : vector<2x64x64xf32> to vector<2x64xf32>
    %25 = vector.shape_cast %24 : vector<2x64xf32> to vector<2x64x1xf32>
    %26 = tpu.reciprocal %25 {approx = true} : vector<2x64x1xf32> -> vector<2x64x1xf32>
    %27 = vector.broadcast %26 : vector<2x64x1xf32> to vector<2x64x64xf32>
    %28 = arith.mulf %23, %27 : vector<2x64x64xf32>
    %cst_10 = arith.constant dense<0xFF800000> : vector<2x64xf32>
    %29 = vector.multi_reduction <maximumf>, %28, %cst_10 [2] : vector<2x64x64xf32> to vector<2x64xf32>
    %30 = vector.shape_cast %29 : vector<2x64xf32> to vector<2x64x1xf32>
    %31 = vector.broadcast %30 : vector<2x64x1xf32> to vector<2x64x64xf32>
    %32 = arith.cmpf oeq, %28, %31 : vector<2x64x64xf32>
    %c64_i32 = arith.constant 64 : i32
    %33 = vector.broadcast %c64_i32 : i32 to vector<2x64x64xi32>
    %34 = arith.select %32, %13, %33 : vector<2x64x64xi1>, vector<2x64x64xi32>
    %cst_11 = arith.constant dense<2147483647> : vector<2x64xi32>
    %35 = vector.multi_reduction <minsi>, %34, %cst_11 [2] : vector<2x64x64xi32> to vector<2x64xi32>
    %36 = vector.shape_cast %35 : vector<2x64xi32> to vector<2x64x1xi32>
    %37 = vector.broadcast %36 : vector<2x64x1xi32> to vector<2x64x64xi32>
    %38 = arith.cmpi eq, %13, %37 : vector<2x64x64xi32>
    %cst_12 = arith.constant 0xFF800000 : f32
    %39 = vector.broadcast %cst_12 : f32 to vector<2x64x64xf32>
    %40 = arith.select %38, %39, %28 : vector<2x64x64xi1>, vector<2x64x64xf32>
    %cst_13 = arith.constant dense<0xFF800000> : vector<2x64xf32>
    %41 = vector.multi_reduction <maximumf>, %40, %cst_13 [2] : vector<2x64x64xf32> to vector<2x64xf32>
    %42 = vector.shape_cast %41 : vector<2x64xf32> to vector<2x64x1xf32>
    %43 = vector.broadcast %42 : vector<2x64x1xf32> to vector<2x64x64xf32>
    %44 = arith.cmpf oeq, %40, %43 : vector<2x64x64xf32>
    %c64_i32_14 = arith.constant 64 : i32
    %45 = vector.broadcast %c64_i32_14 : i32 to vector<2x64x64xi32>
    %46 = arith.select %44, %13, %45 : vector<2x64x64xi1>, vector<2x64x64xi32>
    %cst_15 = arith.constant dense<2147483647> : vector<2x64xi32>
    %47 = vector.multi_reduction <minsi>, %46, %cst_15 [2] : vector<2x64x64xi32> to vector<2x64xi32>
    %48 = vector.shape_cast %47 : vector<2x64xi32> to vector<2x64x1xi32>
    %49 = vector.broadcast %48 : vector<2x64x1xi32> to vector<2x64x64xi32>
    %50 = arith.cmpi eq, %13, %49 : vector<2x64x64xi32>
    %cst_16 = arith.constant 0xFF800000 : f32
    %51 = vector.broadcast %cst_16 : f32 to vector<2x64x64xf32>
    %52 = arith.select %50, %51, %40 : vector<2x64x64xi1>, vector<2x64x64xf32>
    %cst_17 = arith.constant dense<0xFF800000> : vector<2x64xf32>
    %53 = vector.multi_reduction <maximumf>, %52, %cst_17 [2] : vector<2x64x64xf32> to vector<2x64xf32>
    %54 = vector.shape_cast %53 : vector<2x64xf32> to vector<2x64x1xf32>
    %55 = vector.broadcast %54 : vector<2x64x1xf32> to vector<2x64x64xf32>
    %56 = arith.cmpf oeq, %52, %55 : vector<2x64x64xf32>
    %c64_i32_18 = arith.constant 64 : i32
    %57 = vector.broadcast %c64_i32_18 : i32 to vector<2x64x64xi32>
    %58 = arith.select %56, %13, %57 : vector<2x64x64xi1>, vector<2x64x64xi32>
    %cst_19 = arith.constant dense<2147483647> : vector<2x64xi32>
    %59 = vector.multi_reduction <minsi>, %58, %cst_19 [2] : vector<2x64x64xi32> to vector<2x64xi32>
    %60 = vector.shape_cast %59 : vector<2x64xi32> to vector<2x64x1xi32>
    %61 = vector.broadcast %60 : vector<2x64x1xi32> to vector<2x64x64xi32>
    %62 = arith.cmpi eq, %13, %61 : vector<2x64x64xi32>
    %cst_20 = arith.constant 0xFF800000 : f32
    %63 = vector.broadcast %cst_20 : f32 to vector<2x64x64xf32>
    %64 = arith.select %62, %63, %52 : vector<2x64x64xi1>, vector<2x64x64xf32>
    %cst_21 = arith.constant dense<0xFF800000> : vector<2x64xf32>
    %65 = vector.multi_reduction <maximumf>, %64, %cst_21 [2] : vector<2x64x64xf32> to vector<2x64xf32>
    %66 = vector.shape_cast %65 : vector<2x64xf32> to vector<2x64x1xf32>
    %67 = vector.broadcast %66 : vector<2x64x1xf32> to vector<2x64x64xf32>
    %68 = arith.cmpf oeq, %64, %67 : vector<2x64x64xf32>
    %c64_i32_22 = arith.constant 64 : i32
    %69 = vector.broadcast %c64_i32_22 : i32 to vector<2x64x64xi32>
    %70 = arith.select %68, %13, %69 : vector<2x64x64xi1>, vector<2x64x64xi32>
    %cst_23 = arith.constant dense<2147483647> : vector<2x64xi32>
    %71 = vector.multi_reduction <minsi>, %70, %cst_23 [2] : vector<2x64x64xi32> to vector<2x64xi32>
    %72 = vector.shape_cast %71 : vector<2x64xi32> to vector<2x64x1xi32>
    %73 = vector.broadcast %72 : vector<2x64x1xi32> to vector<2x64x64xi32>
    %74 = arith.cmpi eq, %13, %73 : vector<2x64x64xi32>
    %cst_24 = arith.constant 0xFF800000 : f32
    %75 = vector.broadcast %cst_24 : f32 to vector<2x64x64xf32>
    %76 = arith.select %74, %75, %64 : vector<2x64x64xi1>, vector<2x64x64xf32>
    %cst_25 = arith.constant 0xFF800000 : f32
    %77 = vector.broadcast %cst_25 : f32 to vector<2x64x64xf32>
    %78 = arith.cmpf oeq, %76, %77 : vector<2x64x64xf32>
    %cst_26 = arith.constant 0.000000e+00 : f32
    %79 = vector.broadcast %cst_26 : f32 to vector<2x64x64xf32>
    %80 = arith.select %78, %28, %79 : vector<2x64x64xi1>, vector<2x64x64xf32>
    %81 = arith.cmpi eq, %14, %13 : vector<2x64x64xi32>
    %cst_27 = arith.constant 1.000000e+00 : f32
    %82 = vector.broadcast %cst_27 : f32 to vector<2x64x64xf32>
    %83 = arith.select %81, %82, %80 : vector<2x64x64xi1>, vector<2x64x64xf32>
    %cst_28 = arith.constant dense<0.000000e+00> : vector<2x64xf32>
    %84 = vector.multi_reduction <add>, %83, %cst_28 [2] : vector<2x64x64xf32> to vector<2x64xf32>
    %85 = vector.shape_cast %84 : vector<2x64xf32> to vector<2x64x1xf32>
    %cst_29 = arith.constant 1.000000e+00 : f32
    %86 = vector.broadcast %cst_29 : f32 to vector<2x64x1xf32>
    %87 = arith.maximumf %85, %86 : vector<2x64x1xf32>
    %88 = math.rsqrt %87 : vector<2x64x1xf32>
    %89 = vector.broadcast %88 : vector<2x64x1xf32> to vector<2x64x32xf32>
    %90 = arith.mulf %89, %5 : vector<2x64x32xf32>
    "tpu.trace_start"() <{level = 10 : i32, message = "bcd,bdo->bco"}> : () -> ()
    %cst_30 = arith.constant dense<0.000000e+00> : vector<2x64x32xf32>
    %91 = tpu.matmul %83, %90, %cst_30 {dimension_numbers = #tpu.dot_dimension_numbers<[2], [1], [1], [2], [0, 0, 0, 1, 1, 2], [0], [0]>} : vector<2x64x64xf32>, vector<2x64x32xf32>, vector<2x64x32xf32> -> vector<2x64x32xf32>
    "tpu.trace_stop"() : () -> ()
    %92 = vector.broadcast %88 : vector<2x64x1xf32> to vector<2x64x32xf32>
    %93 = arith.mulf %92, %91 : vector<2x64x32xf32>
    %c0_31 = arith.constant 0 : index
    %c0_32 = arith.constant 0 : index
    %94 = vector.load %arg4[%c0_31, %c0_32] : memref<1x32xf32, #tpu.memory_space<vmem>>, vector<1x32xf32>
    %95 = vector.shape_cast %94 : vector<1x32xf32> to vector<1x1x32xf32>
    %96 = vector.broadcast %95 : vector<1x1x32xf32> to vector<2x64x32xf32>
    %97 = arith.addf %93, %96 : vector<2x64x32xf32>
    %cst_33 = arith.constant 0.000000e+00 : f32
    %98 = vector.broadcast %cst_33 : f32 to vector<2x64x32xf32>
    %99 = arith.maximumf %97, %98 : vector<2x64x32xf32>
    %c0_34 = arith.constant 0 : index
    %c0_35 = arith.constant 0 : index
    %c0_36 = arith.constant 0 : index
    %100 = vector.load %arg5[%c0_34, %c0_35, %c0_36] : memref<2x64x32xf32, #tpu.memory_space<vmem>>, vector<2x64x32xf32>
    tpu.vector_store %arg5[%c0_34, %c0_35, %c0_36], %99 {strides = array<i32>} : memref<2x64x32xf32, #tpu.memory_space<vmem>>, vector<2x64x32xf32>,
    return
  }
  func.func @transform_0(%arg0: i32) -> (i32, i32, i32) {
    %c0_i32 = arith.constant 0 : i32
    %c0_i32_0 = arith.constant 0 : i32
    %c0_i32_1 = arith.constant 0 : i32
    return %arg0, %c0_i32, %c0_i32_0 : i32, i32, i32
  }
  func.func @transform_1(%arg0: i32) -> (i32, i32) {
    %c0_i32 = arith.constant 0 : i32
    %c0_i32_0 = arith.constant 0 : i32
    %c0_i32_1 = arith.constant 0 : i32
    return %c0_i32, %c0_i32_0 : i32, i32
  }
  func.func @transform_2(%arg0: i32) -> (i32, i32) {
    %c0_i32 = arith.constant 0 : i32
    %c0_i32_0 = arith.constant 0 : i32
    %c0_i32_1 = arith.constant 0 : i32
    return %c0_i32, %c0_i32_0 : i32, i32
  }
  func.func @transform_3(%arg0: i32) -> (i32, i32) {
    %c0_i32 = arith.constant 0 : i32
    %c0_i32_0 = arith.constant 0 : i32
    %c0_i32_1 = arith.constant 0 : i32
    return %c0_i32, %c0_i32_0 : i32, i32
  }
  func.func @transform_4(%arg0: i32) -> (i32, i32, i32) {
    %c0_i32 = arith.constant 0 : i32
    %c0_i32_0 = arith.constant 0 : i32
    %c0_i32_1 = arith.constant 0 : i32
    return %arg0, %c0_i32, %c0_i32_0 : i32, i32, i32
  }
}

</mosaic_0001>

<llo_original>
// kernel: tpu_custom_call.1
$region0: #{tpu_custom_call.1}
  #allocation0 [shape = 'u32[]', space=smem, size = 0x4, offset = 0x4, fixed_abs, tag = 'smem constant byte address 0x4 - core index']
  #allocation1 [shape = 'u32[144,128]{1,0:T(1,128)}', space=vmem, size = 0x12000, scoped, tag = 'internal scratch']
  %s0 = inlined_call_operand.vmem [shape: f32[2,64,16], index: 0, kind: input, shape index: {}]
  %s1 = inlined_call_operand.vmem [shape: f32[16,40], index: 1, kind: input, shape index: {}]
  %s2 = inlined_call_operand.vmem [shape: f32[1,8], index: 2, kind: input, shape index: {}]
  %s3 = inlined_call_operand.vmem [shape: f32[1,32], index: 3, kind: input, shape index: {}]
  %s4 = inlined_call_operand.vmem [shape: f32[2,64,32], index: 4, kind: output, shape index: {}]
  %s5 = sld [smem:[#allocation0]]
  $region26: #{tpu_custom_call.1} parent=0
    _
  %s7 = ssub.s32 1, %s5
  %s8 = scalar_select 0, %s7, %s5
  // Predicated region
  $region2: #{tpu_custom_call.1} parent=0 // pred_check
    _
  $region3: #{tpu_custom_call.1} parent=0 // pred_check_branch
    %10 = sbr.rel (0) target = $region5
  $region4: #{tpu_custom_call.1} parent=0 // pred_region
    _
  $region5: #{tpu_custom_call.1} parent=0 // pred_fallthru
    _
  // Predicated region
  $region6: #{tpu_custom_call.1} parent=0 // pred_check
    _
  $region7: #{tpu_custom_call.1} parent=0 // pred_check_branch
    %12 = sbr.rel (0) target = $region9
  $region8: #{tpu_custom_call.1} parent=0 // pred_region
    _
  $region9: #{tpu_custom_call.1} parent=0 // pred_fallthru
    _
  // Predicated region
  $region10: #{tpu_custom_call.1} parent=0 // pred_check
    _
  $region11: #{tpu_custom_call.1} parent=0 // pred_check_branch
    %14 = sbr.rel (0) target = $region13
  $region12: #{tpu_custom_call.1} parent=0 // pred_region
    _
  $region13: #{tpu_custom_call.1} parent=0 // pred_fallthru
    _
  // Predicated region
  $region14: #{tpu_custom_call.1} parent=0 // pred_check
    _
  $region15: #{tpu_custom_call.1} parent=0 // pred_check_branch
    %16 = sbr.rel (0) target = $region17
  $region16: #{tpu_custom_call.1} parent=0 // pred_region
    _
  $region17: #{tpu_custom_call.1} parent=0 // pred_fallthru
    _
  %v17 = vld [vmem:[%s0] sm:$0xff]
  %v18 = vld [vmem:[%s0 + $0x8] sm:$0xff]
  %v19 = vld [vmem:[%s0 + $0x10] sm:$0xff]
  %v20 = vld [vmem:[%s0 + $0x18] sm:$0xff]
  %v21 = vld [vmem:[%s0 + $0x20] sm:$0xff]
  %v22 = vld [vmem:[%s0 + $0x28] sm:$0xff]
  %v23 = vld [vmem:[%s0 + $0x30] sm:$0xff]
  %v24 = vld [vmem:[%s0 + $0x38] sm:$0xff]
  %v25 = vld [vmem:[%s0 + $0x40] sm:$0xff]
  %v26 = vld [vmem:[%s0 + $0x48] sm:$0xff]
  %v27 = vld [vmem:[%s0 + $0x50] sm:$0xff]
  %v28 = vld [vmem:[%s0 + $0x58] sm:$0xff]
  %v29 = vld [vmem:[%s0 + $0x60] sm:$0xff]
  %v30 = vld [vmem:[%s0 + $0x68] sm:$0xff]
  %v31 = vld [vmem:[%s0 + $0x70] sm:$0xff]
  %v32 = vld [vmem:[%s0 + $0x78] sm:$0xff]
  %v33 = vld [vmem:[%s1] sm:$0xff]
  %v34 = vld [vmem:[%s1 + $0x8] sm:$0xff]
  %vm35 = vcmask 130048
  %v37 = vsel %vm35, %v17, 0
  %v40 = vsel %vm35, %v18, 0
  %v43 = vsel %vm35, %v19, 0
  %v46 = vsel %vm35, %v20, 0
  %v49 = vsel %vm35, %v21, 0
  %v52 = vsel %vm35, %v22, 0
  %v55 = vsel %vm35, %v23, 0
  %v58 = vsel %vm35, %v24, 0
  %v61 = vsel %vm35, %v25, 0
  %v64 = vsel %vm35, %v26, 0
  %v67 = vsel %vm35, %v27, 0
  %v70 = vsel %vm35, %v28, 0
  %v73 = vsel %vm35, %v29, 0
  %v76 = vsel %vm35, %v30, 0
  %v79 = vsel %vm35, %v31, 0
  %v82 = vsel %vm35, %v32, 0
  %84 = vmatprep.subr.mxu0 0.0
  %85 = vmatpush1.msra.mxu0 %v33
  %86 = vmatprep.subr.mxu0 0.0
  %87 = vmatpush1.msra.mxu0 %v34
  %88 = vmatprep.subr.mxu0 0.0
  %89 = vmatpush1.msra.mxu0 0.0
  %90 = vmatprep.subr.mxu0 0.0
  %91 = vmatpush1.msra.mxu0 0.0
  %92 = vmatprep.subr.mxu0 0.0
  %93 = vmatpush1.msra.mxu0 0.0
  %94 = vmatprep.subr.mxu0 0.0
  %95 = vmatpush1.msra.mxu0 0.0
  %96 = vmatprep.subr.mxu0 0.0
  %97 = vmatpush1.msra.mxu0 0.0
  %98 = vmatprep.subr.mxu0 0.0
  %99 = vmatpush1.msra.mxu0 0.0
  %100 = vmatprep.subr.mxu0 0.0
  %101 = vmatpush1.msra.mxu0 0.0
  %102 = vmatprep.subr.mxu0 0.0
  %103 = vmatpush1.msra.mxu0 0.0
  %104 = vmatprep.subr.mxu0 0.0
  %105 = vmatpush1.msra.mxu0 0.0
  %106 = vmatprep.subr.mxu0 0.0
  %107 = vmatpush1.msra.mxu0 0.0
  %108 = vmatprep.subr.mxu0 0.0
  %109 = vmatpush1.msra.mxu0 0.0
  %110 = vmatprep.subr.mxu0 0.0
  %111 = vmatpush1.msra.mxu0 0.0
  %112 = vmatprep.subr.mxu0 0.0
  %113 = vmatpush1.msra.mxu0 0.0
  %114 = vmatprep.subr.mxu0 0.0
  %115 = vmatpush1.msra.mxu0 0.0
  %116 = vmatprep.subr.mxu0 0.0
  %117 = vmatpush1.msra.mxu0 0.0
  %118 = vmatprep.subr.mxu0 0.0
  %119 = vmatpush1.msra.mxu0 0.0
  %120 = vmatprep.subr.mxu0 0.0
  %121 = vmatpush1.msra.mxu0 0.0
  %122 = vmatprep.subr.mxu0 0.0
  %123 = vmatpush1.msra.mxu0 0.0
  %124 = vmatprep.subr.mxu0 0.0
  %125 = vmatpush1.msra.mxu0 0.0
  %126 = vmatprep.subr.mxu0 0.0
  %127 = vmatpush1.msra.mxu0 0.0
  %128 = vmatprep.subr.mxu0 0.0
  %129 = vmatpush1.msra.mxu0 0.0
  %130 = vmatprep.subr.mxu0 0.0
  %131 = vmatpush1.msra.mxu0 0.0
  %132 = vmatprep.subr.mxu0 0.0
  %133 = vmatpush1.msra.mxu0 0.0
  %134 = vmatprep.subr.mxu0 0.0
  %135 = vmatpush1.msra.mxu0 0.0
  %136 = vmatprep.subr.mxu0 0.0
  %137 = vmatpush1.msra.mxu0 0.0
  %138 = vmatprep.subr.mxu0 0.0
  %139 = vmatpush1.msra.mxu0 0.0
  %140 = vmatprep.subr.mxu0 0.0
  %141 = vmatpush1.msra.mxu0 0.0
  %142 = vmatprep.subr.mxu0 0.0
  %143 = vmatpush1.msra.mxu0 0.0
  %144 = vmatprep.subr.mxu0 0.0
  %145 = vmatpush1.msra.mxu0 0.0
  %146 = vmatprep.subr.mxu0 0.0
  %147 = vmatpush1.msra.mxu0 0.0
  %148 = vmatprep.mubr.f32.mxu0 0.0
  %149 = vmatmul.mubr.f32.gmra.mrb[0].mxu0 %v37
  %v150 = vpop.f32.mrb[0].mxu0
  %v151 = vadd.f32 0.0, %v150
  %v152 = vpop.f32.mrb[0].mxu0
  %153 = vmatprep.mubr.f32.mxu0 0.0
  %154 = vmatmul.mubr.f32.gmra.mrb[0].mxu0 %v40
  %v155 = vpop.f32.mrb[0].mxu0
  %v156 = vadd.f32 0.0, %v155
  %v157 = vpop.f32.mrb[0].mxu0
  %158 = vmatprep.mubr.f32.mxu0 0.0
  %159 = vmatmul.mubr.f32.gmra.mrb[0].mxu0 %v43
  %v160 = vpop.f32.mrb[0].mxu0
  %v161 = vadd.f32 0.0, %v160
  %v162 = vpop.f32.mrb[0].mxu0
  %163 = vmatprep.mubr.f32.mxu0 0.0
  %164 = vmatmul.mubr.f32.gmra.mrb[0].mxu0 %v46
  %v165 = vpop.f32.mrb[0].mxu0
  %v166 = vadd.f32 0.0, %v165
  %v167 = vpop.f32.mrb[0].mxu0
  %168 = vmatprep.mubr.f32.mxu0 0.0
  %169 = vmatmul.mubr.f32.gmra.mrb[0].mxu0 %v49
  %v170 = vpop.f32.mrb[0].mxu0
  %v171 = vadd.f32 0.0, %v170
  %v172 = vpop.f32.mrb[0].mxu0
  %173 = vmatprep.mubr.f32.mxu0 0.0
  %174 = vmatmul.mubr.f32.gmra.mrb[0].mxu0 %v52
  %v175 = vpop.f32.mrb[0].mxu0
  %v176 = vadd.f32 0.0, %v175
  %v177 = vpop.f32.mrb[0].mxu0
  %178 = vmatprep.mubr.f32.mxu0 0.0
  %179 = vmatmul.mubr.f32.gmra.mrb[0].mxu0 %v55
  %v180 = vpop.f32.mrb[0].mxu0
  %v181 = vadd.f32 0.0, %v180
  %v182 = vpop.f32.mrb[0].mxu0
  %183 = vmatprep.mubr.f32.mxu0 0.0
  %184 = vmatmul.mubr.f32.gmra.mrb[0].mxu0 %v58
  %v185 = vpop.f32.mrb[0].mxu0
  %v186 = vadd.f32 0.0, %v185
  %v187 = vpop.f32.mrb[0].mxu0
  %188 = vmatprep.mubr.f32.mxu0 0.0
  %189 = vmatmul.mubr.f32.gmra.mrb[0].mxu0 %v61
  %v190 = vpop.f32.mrb[0].mxu0
  %v191 = vadd.f32 0.0, %v190
  %v192 = vpop.f32.mrb[0].mxu0
  %193 = vmatprep.mubr.f32.mxu0 0.0
  %194 = vmatmul.mubr.f32.gmra.mrb[0].mxu0 %v64
  %v195 = vpop.f32.mrb[0].mxu0
  %v196 = vadd.f32 0.0, %v195
  %v197 = vpop.f32.mrb[0].mxu0
  %198 = vmatprep.mubr.f32.mxu0 0.0
  %199 = vmatmul.mubr.f32.gmra.mrb[0].mxu0 %v67
  %v200 = vpop.f32.mrb[0].mxu0
  %v201 = vadd.f32 0.0, %v200
  %v202 = vpop.f32.mrb[0].mxu0
  %203 = vmatprep.mubr.f32.mxu0 0.0
  %204 = vmatmul.mubr.f32.gmra.mrb[0].mxu0 %v70
  %v205 = vpop.f32.mrb[0].mxu0
  %v206 = vadd.f32 0.0, %v205
  %v207 = vpop.f32.mrb[0].mxu0
  %208 = vmatprep.mubr.f32.mxu0 0.0
  %209 = vmatmul.mubr.f32.gmra.mrb[0].mxu0 %v73
  %v210 = vpop.f32.mrb[0].mxu0
  %v211 = vadd.f32 0.0, %v210
  %v212 = vpop.f32.mrb[0].mxu0
  %213 = vmatprep.mubr.f32.mxu0 0.0
  %214 = vmatmul.mubr.f32.gmra.mrb[0].mxu0 %v76
  %v215 = vpop.f32.mrb[0].mxu0
  %v216 = vadd.f32 0.0, %v215
  %v217 = vpop.f32.mrb[0].mxu0
  %218 = vmatprep.mubr.f32.mxu0 0.0
  %219 = vmatmul.mubr.f32.gmra.mrb[0].mxu0 %v79
  %v220 = vpop.f32.mrb[0].mxu0
  %v221 = vadd.f32 0.0, %v220
  %v222 = vpop.f32.mrb[0].mxu0
  %223 = vmatprep.mubr.f32.mxu0 0.0
  %224 = vmatmul.mubr.f32.gmra.mrb[0].mxu0 %v82
  %v225 = vpop.f32.mrb[0].mxu0
  %v226 = vadd.f32 0.0, %v225
  %v227 = vpop.f32.mrb[0].mxu0
  %228 = vdwg.mxu0
  %v229 = vld [vmem:[%s2] sm:$0x1]
  %v231 = vlaneseq
  %v232 = vshrl.u32 %v231, 7
  %v233 = vsub.s32 0, %v232
  %v234 = vrot.slane %v229, %v233
  %235 = vrot.lane.b32.xlu0 %v234, 32
  %v236 = vpop.permute.xlu0 %235
  %v238 = vadd.f32 %v151, %v236
  %v239 = vadd.f32 %v156, %v236
  %v240 = vadd.f32 %v161, %v236
  %v241 = vadd.f32 %v166, %v236
  %v242 = vadd.f32 %v171, %v236
  %v243 = vadd.f32 %v176, %v236
  %v244 = vadd.f32 %v181, %v236
  %v245 = vadd.f32 %v186, %v236
  %v246 = vadd.f32 %v191, %v236
  %v247 = vadd.f32 %v196, %v236
  %v248 = vadd.f32 %v201, %v236
  %v249 = vadd.f32 %v206, %v236
  %v250 = vadd.f32 %v211, %v236
  %v251 = vadd.f32 %v216, %v236
  %v252 = vadd.f32 %v221, %v236
  %v253 = vadd.f32 %v226, %v236
  %v254 = vtanh.pop %v238
  %v255 = vtanh.pop %v239
  %v256 = vtanh.pop %v240
  %v257 = vtanh.pop %v241
  %v258 = vtanh.pop %v242
  %v259 = vtanh.pop %v243
  %v260 = vtanh.pop %v244
  %v261 = vtanh.pop %v245
  %v262 = vtanh.pop %v246
  %v263 = vtanh.pop %v247
  %v264 = vtanh.pop %v248
  %v265 = vtanh.pop %v249
  %v266 = vtanh.pop %v250
  %v267 = vtanh.pop %v251
  %v268 = vtanh.pop %v252
  %v269 = vtanh.pop %v253
  %278 = vrot.lane.b32.xlu0 %v254, 96
  %v279 = vpop.permute.xlu0 %278
  %280 = vrot.lane.b32.xlu0 %v255, 96
  %v281 = vpop.permute.xlu0 %280
  %282 = vrot.lane.b32.xlu0 %v256, 96
  %v283 = vpop.permute.xlu0 %282
  %284 = vrot.lane.b32.xlu0 %v257, 96
  %v285 = vpop.permute.xlu0 %284
  %286 = vrot.lane.b32.xlu0 %v258, 96
  %v287 = vpop.permute.xlu0 %286
  %288 = vrot.lane.b32.xlu0 %v259, 96
  %v289 = vpop.permute.xlu0 %288
  %290 = vrot.lane.b32.xlu0 %v260, 96
  %v291 = vpop.permute.xlu0 %290
  %292 = vrot.lane.b32.xlu0 %v261, 96
  %v293 = vpop.permute.xlu0 %292
  %vm294 = vcmask 64512
  %v295 = vsel %vm294, %v279, 0
  %v297 = vsel %vm294, %v281, 0
  %v299 = vsel %vm294, %v283, 0
  %v301 = vsel %vm294, %v285, 0
  %v303 = vsel %vm294, %v287, 0
  %v305 = vsel %vm294, %v289, 0
  %v307 = vsel %vm294, %v291, 0
  %v309 = vsel %vm294, %v293, 0
  %311 = vmatprep.subr.mxu0 0.0
  %312 = vmatpush1.xpose.msra.mxu0 %v295
  %313 = vmatprep.subr.mxu0 0.0
  %314 = vmatpush1.xpose.msra.mxu0 %v297
  %315 = vmatprep.subr.mxu0 0.0
  %316 = vmatpush1.xpose.msra.mxu0 %v299
  %317 = vmatprep.subr.mxu0 0.0
  %318 = vmatpush1.xpose.msra.mxu0 %v301
  %319 = vmatprep.subr.mxu0 0.0
  %320 = vmatpush1.xpose.msra.mxu0 %v303
  %321 = vmatprep.subr.mxu0 0.0
  %322 = vmatpush1.xpose.msra.mxu0 %v305
  %323 = vmatprep.subr.mxu0 0.0
  %324 = vmatpush1.xpose.msra.mxu0 %v307
  %325 = vmatprep.subr.mxu0 0.0
  %326 = vmatpush1.xpose.msra.mxu0 %v309
  %327 = vmatprep.subr.mxu0 0.0
  %328 = vmatpush1.xpose.msra.mxu0 0.0
  %329 = vmatprep.subr.mxu0 0.0
  %330 = vmatpush1.xpose.msra.mxu0 0.0
  %331 = vmatprep.subr.mxu0 0.0
  %332 = vmatpush1.xpose.msra.mxu0 0.0
  %333 = vmatprep.subr.mxu0 0.0
  %334 = vmatpush1.xpose.msra.mxu0 0.0
  %335 = vmatprep.subr.mxu0 0.0
  %336 = vmatpush1.xpose.msra.mxu0 0.0
  %337 = vmatprep.subr.mxu0 0.0
  %338 = vmatpush1.xpose.msra.mxu0 0.0
  %339 = vmatprep.subr.mxu0 0.0
  %340 = vmatpush1.xpose.msra.mxu0 0.0
  %341 = vmatprep.subr.mxu0 0.0
  %342 = vmatpush1.xpose.msra.mxu0 0.0
  %343 = vmatprep.subr.mxu0 0.0
  %344 = vmatpush1.xpose.msra.mxu0 0.0
  %345 = vmatprep.subr.mxu0 0.0
  %346 = vmatpush1.xpose.msra.mxu0 0.0
  %347 = vmatprep.subr.mxu0 0.0
  %348 = vmatpush1.xpose.msra.mxu0 0.0
  %349 = vmatprep.subr.mxu0 0.0
  %350 = vmatpush1.xpose.msra.mxu0 0.0
  %351 = vmatprep.subr.mxu0 0.0
  %352 = vmatpush1.xpose.msra.mxu0 0.0
  %353 = vmatprep.subr.mxu0 0.0
  %354 = vmatpush1.xpose.msra.mxu0 0.0
  %355 = vmatprep.subr.mxu0 0.0
  %356 = vmatpush1.xpose.msra.mxu0 0.0
  %357 = vmatprep.subr.mxu0 0.0
  %358 = vmatpush1.xpose.msra.mxu0 0.0
  %359 = vmatprep.subr.mxu0 0.0
  %360 = vmatpush1.xpose.msra.mxu0 0.0
  %361 = vmatprep.subr.mxu0 0.0
  %362 = vmatpush1.xpose.msra.mxu0 0.0
  %363 = vmatprep.subr.mxu0 0.0
  %364 = vmatpush1.xpose.msra.mxu0 0.0
  %365 = vmatprep.subr.mxu0 0.0
  %366 = vmatpush1.xpose.msra.mxu0 0.0
  %367 = vmatprep.subr.mxu0 0.0
  %368 = vmatpush1.xpose.msra.mxu0 0.0
  %369 = vmatprep.subr.mxu0 0.0
  %370 = vmatpush1.xpose.msra.mxu0 0.0
  %371 = vmatprep.subr.mxu0 0.0
  %372 = vmatpush1.xpose.msra.mxu0 0.0
  %373 = vmatprep.subr.mxu0 0.0
  %374 = vmatpush1.xpose.msra.mxu0 0.0
  %375 = vmatprep.mubr.f32.mxu0 0.0
  %376 = vmatmul.mubr.f32.gmra.mrb[0].mxu0 %v295
  %v377 = vpop.f32.mrb[0].mxu0
  %v378 = vadd.f32 0.0, %v377
  %v379 = vpop.f32.mrb[0].mxu0
  %380 = vmatprep.mubr.f32.mxu0 0.0
  %381 = vmatmul.mubr.f32.gmra.mrb[0].mxu0 %v297
  %v382 = vpop.f32.mrb[0].mxu0
  %v383 = vadd.f32 0.0, %v382
  %v384 = vpop.f32.mrb[0].mxu0
  %385 = vmatprep.mubr.f32.mxu0 0.0
  %386 = vmatmul.mubr.f32.gmra.mrb[0].mxu0 %v299
  %v387 = vpop.f32.mrb[0].mxu0
  %v388 = vadd.f32 0.0, %v387
  %v389 = vpop.f32.mrb[0].mxu0
  %390 = vmatprep.mubr.f32.mxu0 0.0
  %391 = vmatmul.mubr.f32.gmra.mrb[0].mxu0 %v301
  %v392 = vpop.f32.mrb[0].mxu0
  %v393 = vadd.f32 0.0, %v392
  %v394 = vpop.f32.mrb[0].mxu0
  %395 = vmatprep.mubr.f32.mxu0 0.0
  %396 = vmatmul.mubr.f32.gmra.mrb[0].mxu0 %v303
  %v397 = vpop.f32.mrb[0].mxu0
  %v398 = vadd.f32 0.0, %v397
  %v399 = vpop.f32.mrb[0].mxu0
  %400 = vmatprep.mubr.f32.mxu0 0.0
  %401 = vmatmul.mubr.f32.gmra.mrb[0].mxu0 %v305
  %v402 = vpop.f32.mrb[0].mxu0
  %v403 = vadd.f32 0.0, %v402
  %v404 = vpop.f32.mrb[0].mxu0
  %405 = vmatprep.mubr.f32.mxu0 0.0
  %406 = vmatmul.mubr.f32.gmra.mrb[0].mxu0 %v307
  %v407 = vpop.f32.mrb[0].mxu0
  %v408 = vadd.f32 0.0, %v407
  %v409 = vpop.f32.mrb[0].mxu0
  %410 = vmatprep.mubr.f32.mxu0 0.0
  %411 = vmatmul.mubr.f32.gmra.mrb[0].mxu0 %v309
  %v412 = vpop.f32.mrb[0].mxu0
  %v413 = vadd.f32 0.0, %v412
  %v414 = vpop.f32.mrb[0].mxu0
  %415 = vdwg.mxu0
  %424 = vrot.lane.b32.xlu0 %v262, 96
  %v425 = vpop.permute.xlu0 %424
  %426 = vrot.lane.b32.xlu0 %v263, 96
  %v427 = vpop.permute.xlu0 %426
  %428 = vrot.lane.b32.xlu0 %v264, 96
  %v429 = vpop.permute.xlu0 %428
  %430 = vrot.lane.b32.xlu0 %v265, 96
  %v431 = vpop.permute.xlu0 %430
  %432 = vrot.lane.b32.xlu0 %v266, 96
  %v433 = vpop.permute.xlu0 %432
  %434 = vrot.lane.b32.xlu0 %v267, 96
  %v435 = vpop.permute.xlu0 %434
  %436 = vrot.lane.b32.xlu0 %v268, 96
  %v437 = vpop.permute.xlu0 %436
  %438 = vrot.lane.b32.xlu0 %v269, 96
  %v439 = vpop.permute.xlu0 %438
  %v440 = vsel %vm294, %v425, 0
  %v442 = vsel %vm294, %v427, 0
  %v444 = vsel %vm294, %v429, 0
  %v446 = vsel %vm294, %v431, 0
  %v448 = vsel %vm294, %v433, 0
  %v450 = vsel %vm294, %v435, 0
  %v452 = vsel %vm294, %v437, 0
  %v454 = vsel %vm294, %v439, 0
  %456 = vmatprep.subr.mxu0 0.0
  %457 = vmatpush1.xpose.msra.mxu0 %v440
  %458 = vmatprep.subr.mxu0 0.0
  %459 = vmatpush1.xpose.msra.mxu0 %v442
  %460 = vmatprep.subr.mxu0 0.0
  %461 = vmatpush1.xpose.msra.mxu0 %v444
  %462 = vmatprep.subr.mxu0 0.0
  %463 = vmatpush1.xpose.msra.mxu0 %v446
  %464 = vmatprep.subr.mxu0 0.0
  %465 = vmatpush1.xpose.msra.mxu0 %v448
  %466 = vmatprep.subr.mxu0 0.0
  %467 = vmatpush1.xpose.msra.mxu0 %v450
  %468 = vmatprep.subr.mxu0 0.0
  %469 = vmatpush1.xpose.msra.mxu0 %v452
  %470 = vmatprep.subr.mxu0 0.0
  %471 = vmatpush1.xpose.msra.mxu0 %v454
  %472 = vmatprep.subr.mxu0 0.0
  %473 = vmatpush1.xpose.msra.mxu0 0.0
  %474 = vmatprep.subr.mxu0 0.0
  %475 = vmatpush1.xpose.msra.mxu0 0.0
  %476 = vmatprep.subr.mxu0 0.0
  %477 = vmatpush1.xpose.msra.mxu0 0.0
  %478 = vmatprep.subr.mxu0 0.0
  %479 = vmatpush1.xpose.msra.mxu0 0.0
  %480 = vmatprep.subr.mxu0 0.0
  %481 = vmatpush1.xpose.msra.mxu0 0.0
  %482 = vmatprep.subr.mxu0 0.0
  %483 = vmatpush1.xpose.msra.mxu0 0.0
  %484 = vmatprep.subr.mxu0 0.0
  %485 = vmatpush1.xpose.msra.mxu0 0.0
  %486 = vmatprep.subr.mxu0 0.0
  %487 = vmatpush1.xpose.msra.mxu0 0.0
  %488 = vmatprep.subr.mxu0 0.0
  %489 = vmatpush1.xpose.msra.mxu0 0.0
  %490 = vmatprep.subr.mxu0 0.0
  %491 = vmatpush1.xpose.msra.mxu0 0.0
  %492 = vmatprep.subr.mxu0 0.0
  %493 = vmatpush1.xpose.msra.mxu0 0.0
  %494 = vmatprep.subr.mxu0 0.0
  %495 = vmatpush1.xpose.msra.mxu0 0.0
  %496 = vmatprep.subr.mxu0 0.0
  %497 = vmatpush1.xpose.msra.mxu0 0.0
  %498 = vmatprep.subr.mxu0 0.0
  %499 = vmatpush1.xpose.msra.mxu0 0.0
  %500 = vmatprep.subr.mxu0 0.0
  %501 = vmatpush1.xpose.msra.mxu0 0.0
  %502 = vmatprep.subr.mxu0 0.0
  %503 = vmatpush1.xpose.msra.mxu0 0.0
  %504 = vmatprep.subr.mxu0 0.0
  %505 = vmatpush1.xpose.msra.mxu0 0.0
  %506 = vmatprep.subr.mxu0 0.0
  %507 = vmatpush1.xpose.msra.mxu0 0.0
  %508 = vmatprep.subr.mxu0 0.0
  %509 = vmatpush1.xpose.msra.mxu0 0.0
  %510 = vmatprep.subr.mxu0 0.0
  %511 = vmatpush1.xpose.msra.mxu0 0.0
  %512 = vmatprep.subr.mxu0 0.0
  %513 = vmatpush1.xpose.msra.mxu0 0.0
  %514 = vmatprep.subr.mxu0 0.0
  %515 = vmatpush1.xpose.msra.mxu0 0.0
  %516 = vmatprep.subr.mxu0 0.0
  %517 = vmatpush1.xpose.msra.mxu0 0.0
  %518 = vmatprep.subr.mxu0 0.0
  %519 = vmatpush1.xpose.msra.mxu0 0.0
  %520 = vmatprep.mubr.f32.mxu0 0.0
  %521 = vmatmul.mubr.f32.gmra.mrb[0].mxu0 %v440
  %v522 = vpop.f32.mrb[0].mxu0
  %v523 = vadd.f32 0.0, %v522
  %v524 = vpop.f32.mrb[0].mxu0
  %525 = vmatprep.mubr.f32.mxu0 0.0
  %526 = vmatmul.mubr.f32.gmra.mrb[0].mxu0 %v442
  %v527 = vpop.f32.mrb[0].mxu0
  %v528 = vadd.f32 0.0, %v527
  %v529 = vpop.f32.mrb[0].mxu0
  %530 = vmatprep.mubr.f32.mxu0 0.0
  %531 = vmatmul.mubr.f32.gmra.mrb[0].mxu0 %v444
  %v532 = vpop.f32.mrb[0].mxu0
  %v533 = vadd.f32 0.0, %v532
  %v534 = vpop.f32.mrb[0].mxu0
  %535 = vmatprep.mubr.f32.mxu0 0.0
  %536 = vmatmul.mubr.f32.gmra.mrb[0].mxu0 %v446
  %v537 = vpop.f32.mrb[0].mxu0
  %v538 = vadd.f32 0.0, %v537
  %v539 = vpop.f32.mrb[0].mxu0
  %540 = vmatprep.mubr.f32.mxu0 0.0
  %541 = vmatmul.mubr.f32.gmra.mrb[0].mxu0 %v448
  %v542 = vpop.f32.mrb[0].mxu0
  %v543 = vadd.f32 0.0, %v542
  %v544 = vpop.f32.mrb[0].mxu0
  %545 = vmatprep.mubr.f32.mxu0 0.0
  %546 = vmatmul.mubr.f32.gmra.mrb[0].mxu0 %v450
  %v547 = vpop.f32.mrb[0].mxu0
  %v548 = vadd.f32 0.0, %v547
  %v549 = vpop.f32.mrb[0].mxu0
  %550 = vmatprep.mubr.f32.mxu0 0.0
  %551 = vmatmul.mubr.f32.gmra.mrb[0].mxu0 %v452
  %v552 = vpop.f32.mrb[0].mxu0
  %v553 = vadd.f32 0.0, %v552
  %v554 = vpop.f32.mrb[0].mxu0
  %555 = vmatprep.mubr.f32.mxu0 0.0
  %556 = vmatmul.mubr.f32.gmra.mrb[0].mxu0 %v454
  %v557 = vpop.f32.mrb[0].mxu0
  %v558 = vadd.f32 0.0, %v557
  %v559 = vpop.f32.mrb[0].mxu0
  %560 = vdwg.mxu0
  %v561 = vlaneseq
  %v562 = vand.u32 %v561, 127
  %v563 = vlaneseq
  %v564 = vshrl.u32 %v563, 7
  %v565 = vadd.s32 %v564, 8
  %v566 = vadd.s32 %v564, 16
  %v567 = vadd.s32 %v564, 24
  %v568 = vadd.s32 %v564, 32
  %v569 = vadd.s32 %v564, 40
  %v570 = vadd.s32 %v564, 48
  %v571 = vadd.s32 %v564, 56
  %vm572 = vcmp.ge.s32.totalorder %v562, 62
  %v573 = vsel %vm572, -1e+30, %v378
  %v574 = vsel %vm572, -1e+30, %v383
  %v575 = vsel %vm572, -1e+30, %v388
  %v576 = vsel %vm572, -1e+30, %v393
  %v577 = vsel %vm572, -1e+30, %v398
  %v578 = vsel %vm572, -1e+30, %v403
  %v579 = vsel %vm572, -1e+30, %v408
  %v580 = vsel %vm572, -1e+30, %v413
  %v581 = vsel %vm572, -1e+30, %v523
  %v582 = vsel %vm572, -1e+30, %v528
  %v583 = vsel %vm572, -1e+30, %v533
  %v584 = vsel %vm572, -1e+30, %v538
  %v585 = vsel %vm572, -1e+30, %v543
  %v586 = vsel %vm572, -1e+30, %v548
  %v587 = vsel %vm572, -1e+30, %v553
  %v588 = vsel %vm572, -1e+30, %v558
  %vm589 = vcmask 523264
  %v590 = vsel %vm589, %v573, -inf
  %591 = vmax.xlane.f32.xlu0 %v590
  %v592 = vpop.xlane.xlu0 %591
  %v593 = vsel %vm589, %v574, -inf
  %594 = vmax.xlane.f32.xlu0 %v593
  %v595 = vpop.xlane.xlu0 %594
  %v596 = vsel %vm589, %v575, -inf
  %597 = vmax.xlane.f32.xlu0 %v596
  %v598 = vpop.xlane.xlu0 %597
  %v599 = vsel %vm589, %v576, -inf
  %600 = vmax.xlane.f32.xlu0 %v599
  %v601 = vpop.xlane.xlu0 %600
  %v602 = vsel %vm589, %v577, -inf
  %603 = vmax.xlane.f32.xlu0 %v602
  %v604 = vpop.xlane.xlu0 %603
  %v605 = vsel %vm589, %v578, -inf
  %606 = vmax.xlane.f32.xlu0 %v605
  %v607 = vpop.xlane.xlu0 %606
  %v608 = vsel %vm589, %v579, -inf
  %609 = vmax.xlane.f32.xlu0 %v608
  %v610 = vpop.xlane.xlu0 %609
  %v611 = vsel %vm589, %v580, -inf
  %612 = vmax.xlane.f32.xlu0 %v611
  %v613 = vpop.xlane.xlu0 %612
  %v614 = vsel %vm589, %v581, -inf
  %615 = vmax.xlane.f32.xlu0 %v614
  %v616 = vpop.xlane.xlu0 %615
  %v617 = vsel %vm589, %v582, -inf
  %618 = vmax.xlane.f32.xlu0 %v617
  %v619 = vpop.xlane.xlu0 %618
  %v620 = vsel %vm589, %v583, -inf
  %621 = vmax.xlane.f32.xlu0 %v620
  %v622 = vpop.xlane.xlu0 %621
  %v623 = vsel %vm589, %v584, -inf
  %624 = vmax.xlane.f32.xlu0 %v623
  %v625 = vpop.xlane.xlu0 %624
  %v626 = vsel %vm589, %v585, -inf
  %627 = vmax.xlane.f32.xlu0 %v626
  %v628 = vpop.xlane.xlu0 %627
  %v629 = vsel %vm589, %v586, -inf
  %630 = vmax.xlane.f32.xlu0 %v629
  %v631 = vpop.xlane.xlu0 %630
  %v632 = vsel %vm589, %v587, -inf
  %633 = vmax.xlane.f32.xlu0 %v632
  %v634 = vpop.xlane.xlu0 %633
  %v635 = vsel %vm589, %v588, -inf
  %636 = vmax.xlane.f32.xlu0 %v635
  %v637 = vpop.xlane.xlu0 %636
  %v638 = vsub.f32 %v573, %v592
  %v639 = vsub.f32 %v574, %v595
  %v640 = vsub.f32 %v575, %v598
  %v641 = vsub.f32 %v576, %v601
  %v642 = vsub.f32 %v577, %v604
  %v643 = vsub.f32 %v578, %v607
  %v644 = vsub.f32 %v579, %v610
  %v645 = vsub.f32 %v580, %v613
  %v646 = vsub.f32 %v581, %v616
  %v647 = vsub.f32 %v582, %v619
  %v648 = vsub.f32 %v583, %v622
  %v649 = vsub.f32 %v584, %v625
  %v650 = vsub.f32 %v585, %v628
  %v651 = vsub.f32 %v586, %v631
  %v652 = vsub.f32 %v587, %v634
  %v653 = vsub.f32 %v588, %v637
  %v654 = vmul.f32 %v638, 1.442695
  %v655 = vpow.pop %v654
  %v656 = vmul.f32 %v639, 1.442695
  %v657 = vpow.pop %v656
  %v658 = vmul.f32 %v640, 1.442695
  %v659 = vpow.pop %v658
  %v660 = vmul.f32 %v641, 1.442695
  %v661 = vpow.pop %v660
  %v662 = vmul.f32 %v642, 1.442695
  %v663 = vpow.pop %v662
  %v664 = vmul.f32 %v643, 1.442695
  %v665 = vpow.pop %v664
  %v666 = vmul.f32 %v644, 1.442695
  %v667 = vpow.pop %v666
  %v668 = vmul.f32 %v645, 1.442695
  %v669 = vpow.pop %v668
  %v670 = vmul.f32 %v646, 1.442695
  %v671 = vpow.pop %v670
  %v672 = vmul.f32 %v647, 1.442695
  %v673 = vpow.pop %v672
  %v674 = vmul.f32 %v648, 1.442695
  %v675 = vpow.pop %v674
  %v676 = vmul.f32 %v649, 1.442695
  %v677 = vpow.pop %v676
  %v678 = vmul.f32 %v650, 1.442695
  %v679 = vpow.pop %v678
  %v680 = vmul.f32 %v651, 1.442695
  %v681 = vpow.pop %v680
  %v682 = vmul.f32 %v652, 1.442695
  %v683 = vpow.pop %v682
  %v684 = vmul.f32 %v653, 1.442695
  %v685 = vpow.pop %v684
  %v686 = vsel %vm589, %v655, 0.0
  %687 = vadd.xlane.f32.xlu0 %v686
  %v688 = vpop.xlane.xlu0 %687
  %v689 = vsel %vm589, %v657, 0.0
  %690 = vadd.xlane.f32.xlu0 %v689
  %v691 = vpop.xlane.xlu0 %690
  %v692 = vsel %vm589, %v659, 0.0
  %693 = vadd.xlane.f32.xlu0 %v692
  %v694 = vpop.xlane.xlu0 %693
  %v695 = vsel %vm589, %v661, 0.0
  %696 = vadd.xlane.f32.xlu0 %v695
  %v697 = vpop.xlane.xlu0 %696
  %v698 = vsel %vm589, %v663, 0.0
  %699 = vadd.xlane.f32.xlu0 %v698
  %v700 = vpop.xlane.xlu0 %699
  %v701 = vsel %vm589, %v665, 0.0
  %702 = vadd.xlane.f32.xlu0 %v701
  %v703 = vpop.xlane.xlu0 %702
  %v704 = vsel %vm589, %v667, 0.0
  %705 = vadd.xlane.f32.xlu0 %v704
  %v706 = vpop.xlane.xlu0 %705
  %v707 = vsel %vm589, %v669, 0.0
  %708 = vadd.xlane.f32.xlu0 %v707
  %v709 = vpop.xlane.xlu0 %708
  %v710 = vsel %vm589, %v671, 0.0
  %711 = vadd.xlane.f32.xlu0 %v710
  %v712 = vpop.xlane.xlu0 %711
  %v713 = vsel %vm589, %v673, 0.0
  %714 = vadd.xlane.f32.xlu0 %v713
  %v715 = vpop.xlane.xlu0 %714
  %v716 = vsel %vm589, %v675, 0.0
  %717 = vadd.xlane.f32.xlu0 %v716
  %v718 = vpop.xlane.xlu0 %717
  %v719 = vsel %vm589, %v677, 0.0
  %720 = vadd.xlane.f32.xlu0 %v719
  %v721 = vpop.xlane.xlu0 %720
  %v722 = vsel %vm589, %v679, 0.0
  %723 = vadd.xlane.f32.xlu0 %v722
  %v724 = vpop.xlane.xlu0 %723
  %v725 = vsel %vm589, %v681, 0.0
  %726 = vadd.xlane.f32.xlu0 %v725
  %v727 = vpop.xlane.xlu0 %726
  %v728 = vsel %vm589, %v683, 0.0
  %729 = vadd.xlane.f32.xlu0 %v728
  %v730 = vpop.xlane.xlu0 %729
  %v731 = vsel %vm589, %v685, 0.0
  %732 = vadd.xlane.f32.xlu0 %v731
  %v733 = vpop.xlane.xlu0 %732
  %v734 = vrcp.pop %v688
  %v735 = vrcp.pop %v691
  %v736 = vrcp.pop %v694
  %v737 = vrcp.pop %v697
  %v738 = vrcp.pop %v700
  %v739 = vrcp.pop %v703
  %v740 = vrcp.pop %v706
  %v741 = vrcp.pop %v709
  %v742 = vrcp.pop %v712
  %v743 = vrcp.pop %v715
  %v744 = vrcp.pop %v718
  %v745 = vrcp.pop %v721
  %v746 = vrcp.pop %v724
  %v747 = vrcp.pop %v727
  %v748 = vrcp.pop %v730
  %v749 = vrcp.pop %v733
  %v750 = vmul.f32 %v655, %v734
  %v751 = vmul.f32 %v657, %v735
  %v752 = vmul.f32 %v659, %v736
  %v753 = vmul.f32 %v661, %v737
  %v754 = vmul.f32 %v663, %v738
  %v755 = vmul.f32 %v665, %v739
  %v756 = vmul.f32 %v667, %v740
  %v757 = vmul.f32 %v669, %v741
  %v758 = vmul.f32 %v671, %v742
  %v759 = vmul.f32 %v673, %v743
  %v760 = vmul.f32 %v675, %v744
  %v761 = vmul.f32 %v677, %v745
  %v762 = vmul.f32 %v679, %v746
  %v763 = vmul.f32 %v681, %v747
  %v764 = vmul.f32 %v683, %v748
  %v765 = vmul.f32 %v685, %v749
  %v766 = vsel %vm589, %v750, -inf
  %767 = vmax.xlane.f32.xlu0 %v766
  %v768 = vpop.xlane.xlu0 %767
  %v769 = vsel %vm589, %v751, -inf
  %770 = vmax.xlane.f32.xlu0 %v769
  %v771 = vpop.xlane.xlu0 %770
  %v772 = vsel %vm589, %v752, -inf
  %773 = vmax.xlane.f32.xlu0 %v772
  %v774 = vpop.xlane.xlu0 %773
  %v775 = vsel %vm589, %v753, -inf
  %776 = vmax.xlane.f32.xlu0 %v775
  %v777 = vpop.xlane.xlu0 %776
  %v778 = vsel %vm589, %v754, -inf
  %779 = vmax.xlane.f32.xlu0 %v778
  %v780 = vpop.xlane.xlu0 %779
  %v781 = vsel %vm589, %v755, -inf
  %782 = vmax.xlane.f32.xlu0 %v781
  %v783 = vpop.xlane.xlu0 %782
  %v784 = vsel %vm589, %v756, -inf
  %785 = vmax.xlane.f32.xlu0 %v784
  %v786 = vpop.xlane.xlu0 %785
  %v787 = vsel %vm589, %v757, -inf
  %788 = vmax.xlane.f32.xlu0 %v787
  %v789 = vpop.xlane.xlu0 %788
  %v790 = vsel %vm589, %v758, -inf
  %791 = vmax.xlane.f32.xlu0 %v790
  %v792 = vpop.xlane.xlu0 %791
  %v793 = vsel %vm589, %v759, -inf
  %794 = vmax.xlane.f32.xlu0 %v793
  %v795 = vpop.xlane.xlu0 %794
  %v796 = vsel %vm589, %v760, -inf
  %797 = vmax.xlane.f32.xlu0 %v796
  %v798 = vpop.xlane.xlu0 %797
  %v799 = vsel %vm589, %v761, -inf
  %800 = vmax.xlane.f32.xlu0 %v799
  %v801 = vpop.xlane.xlu0 %800
  %v802 = vsel %vm589, %v762, -inf
  %803 = vmax.xlane.f32.xlu0 %v802
  %v804 = vpop.xlane.xlu0 %803
  %v805 = vsel %vm589, %v763, -inf
  %806 = vmax.xlane.f32.xlu0 %v805
  %v807 = vpop.xlane.xlu0 %806
  %v808 = vsel %vm589, %v764, -inf
  %809 = vmax.xlane.f32.xlu0 %v808
  %v810 = vpop.xlane.xlu0 %809
  %v811 = vsel %vm589, %v765, -inf
  %812 = vmax.xlane.f32.xlu0 %v811
  %v813 = vpop.xlane.xlu0 %812
  %vm814 = vcmp.eq.f32.partialorder %v750, %v768
  %vm815 = vcmp.eq.f32.partialorder %v751, %v771
  %vm816 = vcmp.eq.f32.partialorder %v752, %v774
  %vm817 = vcmp.eq.f32.partialorder %v753, %v777
  %vm818 = vcmp.eq.f32.partialorder %v754, %v780
  %vm819 = vcmp.eq.f32.partialorder %v755, %v783
  %vm820 = vcmp.eq.f32.partialorder %v756, %v786
  %vm821 = vcmp.eq.f32.partialorder %v757, %v789
  %vm822 = vcmp.eq.f32.partialorder %v758, %v792
  %vm823 = vcmp.eq.f32.partialorder %v759, %v795
  %vm824 = vcmp.eq.f32.partialorder %v760, %v798
  %vm825 = vcmp.eq.f32.partialorder %v761, %v801
  %vm826 = vcmp.eq.f32.partialorder %v762, %v804
  %vm827 = vcmp.eq.f32.partialorder %v763, %v807
  %vm828 = vcmp.eq.f32.partialorder %v764, %v810
  %vm829 = vcmp.eq.f32.partialorder %v765, %v813
  %v830 = vsel %vm814, %v562, 64
  %v831 = vsel %vm815, %v562, 64
  %v832 = vsel %vm816, %v562, 64
  %v833 = vsel %vm817, %v562, 64
  %v834 = vsel %vm818, %v562, 64
  %v835 = vsel %vm819, %v562, 64
  %v836 = vsel %vm820, %v562, 64
  %v837 = vsel %vm821, %v562, 64
  %v838 = vsel %vm822, %v562, 64
  %v839 = vsel %vm823, %v562, 64
  %v840 = vsel %vm824, %v562, 64
  %v841 = vsel %vm825, %v562, 64
  %v842 = vsel %vm826, %v562, 64
  %v843 = vsel %vm827, %v562, 64
  %v844 = vsel %vm828, %v562, 64
  %v845 = vsel %vm829, %v562, 64
  %v846 = vsel %vm589, %v830, 2147483647
  %v847 = vand.u32 %v846, 65535
  %v848 = vshra.s32 %v846, 16
  %v849 = vcvt.s32.f32 %v847
  %v850 = vcvt.s32.f32 %v848
  %851 = vmin.xlane.f32.xlu0 %v850
  %v852 = vpop.xlane.xlu0 %851
  %vm853 = vcmp.eq.f32.partialorder %v850, %v852
  %v854 = vsel %vm853, %v849, inf
  %855 = vmin.xlane.f32.xlu0 %v854
  %v856 = vpop.xlane.xlu0 %855
  %v857 = vcvt.f32.s32 %v856
  %v858 = vcvt.f32.s32 %v852
  %v859 = vshll.u32 %v858, 16
  %v860 = vadd.s32 %v859, %v857
  %v861 = vsel %vm589, %v831, 2147483647
  %v862 = vand.u32 %v861, 65535
  %v863 = vshra.s32 %v861, 16
  %v864 = vcvt.s32.f32 %v862
  %v865 = vcvt.s32.f32 %v863
  %866 = vmin.xlane.f32.xlu0 %v865
  %v867 = vpop.xlane.xlu0 %866
  %vm868 = vcmp.eq.f32.partialorder %v865, %v867
  %v869 = vsel %vm868, %v864, inf
  %870 = vmin.xlane.f32.xlu0 %v869
  %v871 = vpop.xlane.xlu0 %870
  %v872 = vcvt.f32.s32 %v871
  %v873 = vcvt.f32.s32 %v867
  %v874 = vshll.u32 %v873, 16
  %v875 = vadd.s32 %v874, %v872
  %v876 = vsel %vm589, %v832, 2147483647
  %v877 = vand.u32 %v876, 65535
  %v878 = vshra.s32 %v876, 16
  %v879 = vcvt.s32.f32 %v877
  %v880 = vcvt.s32.f32 %v878
  %881 = vmin.xlane.f32.xlu0 %v880
  %v882 = vpop.xlane.xlu0 %881
  %vm883 = vcmp.eq.f32.partialorder %v880, %v882
  %v884 = vsel %vm883, %v879, inf
  %885 = vmin.xlane.f32.xlu0 %v884
  %v886 = vpop.xlane.xlu0 %885
  %v887 = vcvt.f32.s32 %v886
  %v888 = vcvt.f32.s32 %v882
  %v889 = vshll.u32 %v888, 16
  %v890 = vadd.s32 %v889, %v887
  %v891 = vsel %vm589, %v833, 2147483647
  %v892 = vand.u32 %v891, 65535
  %v893 = vshra.s32 %v891, 16
  %v894 = vcvt.s32.f32 %v892
  %v895 = vcvt.s32.f32 %v893
  %896 = vmin.xlane.f32.xlu0 %v895
  %v897 = vpop.xlane.xlu0 %896
  %vm898 = vcmp.eq.f32.partialorder %v895, %v897
  %v899 = vsel %vm898, %v894, inf
  %900 = vmin.xlane.f32.xlu0 %v899
  %v901 = vpop.xlane.xlu0 %900
  %v902 = vcvt.f32.s32 %v901
  %v903 = vcvt.f32.s32 %v897
  %v904 = vshll.u32 %v903, 16
  %v905 = vadd.s32 %v904, %v902
  %v906 = vsel %vm589, %v834, 2147483647
  %v907 = vand.u32 %v906, 65535
  %v908 = vshra.s32 %v906, 16
  %v909 = vcvt.s32.f32 %v907
  %v910 = vcvt.s32.f32 %v908
  %911 = vmin.xlane.f32.xlu0 %v910
  %v912 = vpop.xlane.xlu0 %911
  %vm913 = vcmp.eq.f32.partialorder %v910, %v912
  %v914 = vsel %vm913, %v909, inf
  %915 = vmin.xlane.f32.xlu0 %v914
  %v916 = vpop.xlane.xlu0 %915
  %v917 = vcvt.f32.s32 %v916
  %v918 = vcvt.f32.s32 %v912
  %v919 = vshll.u32 %v918, 16
  %v920 = vadd.s32 %v919, %v917
  %v921 = vsel %vm589, %v835, 2147483647
  %v922 = vand.u32 %v921, 65535
  %v923 = vshra.s32 %v921, 16
  %v924 = vcvt.s32.f32 %v922
  %v925 = vcvt.s32.f32 %v923
  %926 = vmin.xlane.f32.xlu0 %v925
  %v927 = vpop.xlane.xlu0 %926
  %vm928 = vcmp.eq.f32.partialorder %v925, %v927
  %v929 = vsel %vm928, %v924, inf
  %930 = vmin.xlane.f32.xlu0 %v929
  %v931 = vpop.xlane.xlu0 %930
  %v932 = vcvt.f32.s32 %v931
  %v933 = vcvt.f32.s32 %v927
  %v934 = vshll.u32 %v933, 16
  %v935 = vadd.s32 %v934, %v932
  %v936 = vsel %vm589, %v836, 2147483647
  %v937 = vand.u32 %v936, 65535
  %v938 = vshra.s32 %v936, 16
  %v939 = vcvt.s32.f32 %v937
  %v940 = vcvt.s32.f32 %v938
  %941 = vmin.xlane.f32.xlu0 %v940
  %v942 = vpop.xlane.xlu0 %941
  %vm943 = vcmp.eq.f32.partialorder %v940, %v942
  %v944 = vsel %vm943, %v939, inf
  %945 = vmin.xlane.f32.xlu0 %v944
  %v946 = vpop.xlane.xlu0 %945
  %v947 = vcvt.f32.s32 %v946
  %v948 = vcvt.f32.s32 %v942
  %v949 = vshll.u32 %v948, 16
  %v950 = vadd.s32 %v949, %v947
  %v951 = vsel %vm589, %v837, 2147483647
  %v952 = vand.u32 %v951, 65535
  %v953 = vshra.s32 %v951, 16
  %v954 = vcvt.s32.f32 %v952
  %v955 = vcvt.s32.f32 %v953
  %956 = vmin.xlane.f32.xlu0 %v955
  %v957 = vpop.xlane.xlu0 %956
  %vm958 = vcmp.eq.f32.partialorder %v955, %v957
  %v959 = vsel %vm958, %v954, inf
  %960 = vmin.xlane.f32.xlu0 %v959
  %v961 = vpop.xlane.xlu0 %960
  %v962 = vcvt.f32.s32 %v961
  %v963 = vcvt.f32.s32 %v957
  %v964 = vshll.u32 %v963, 16
  %v965 = vadd.s32 %v964, %v962
  %v966 = vsel %vm589, %v838, 2147483647
  %v967 = vand.u32 %v966, 65535
  %v968 = vshra.s32 %v966, 16
  %v969 = vcvt.s32.f32 %v967
  %v970 = vcvt.s32.f32 %v968
  %971 = vmin.xlane.f32.xlu0 %v970
  %v972 = vpop.xlane.xlu0 %971
  %vm973 = vcmp.eq.f32.partialorder %v970, %v972
  %v974 = vsel %vm973, %v969, inf
  %975 = vmin.xlane.f32.xlu0 %v974
  %v976 = vpop.xlane.xlu0 %975
  %v977 = vcvt.f32.s32 %v976
  %v978 = vcvt.f32.s32 %v972
  %v979 = vshll.u32 %v978, 16
  %v980 = vadd.s32 %v979, %v977
  %v981 = vsel %vm589, %v839, 2147483647
  %v982 = vand.u32 %v981, 65535
  %v983 = vshra.s32 %v981, 16
  %v984 = vcvt.s32.f32 %v982
  %v985 = vcvt.s32.f32 %v983
  %986 = vmin.xlane.f32.xlu0 %v985
  %v987 = vpop.xlane.xlu0 %986
  %vm988 = vcmp.eq.f32.partialorder %v985, %v987
  %v989 = vsel %vm988, %v984, inf
  %990 = vmin.xlane.f32.xlu0 %v989
  %v991 = vpop.xlane.xlu0 %990
  %v992 = vcvt.f32.s32 %v991
  %v993 = vcvt.f32.s32 %v987
  %v994 = vshll.u32 %v993, 16
  %v995 = vadd.s32 %v994, %v992
  %v996 = vsel %vm589, %v840, 2147483647
  %v997 = vand.u32 %v996, 65535
  %v998 = vshra.s32 %v996, 16
  %v999 = vcvt.s32.f32 %v997
  %v1000 = vcvt.s32.f32 %v998
  %1001 = vmin.xlane.f32.xlu0 %v1000
  %v1002 = vpop.xlane.xlu0 %1001
  %vm1003 = vcmp.eq.f32.partialorder %v1000, %v1002
  %v1004 = vsel %vm1003, %v999, inf
  %1005 = vmin.xlane.f32.xlu0 %v1004
  %v1006 = vpop.xlane.xlu0 %1005
  %v1007 = vcvt.f32.s32 %v1006
  %v1008 = vcvt.f32.s32 %v1002
  %v1009 = vshll.u32 %v1008, 16
  %v1010 = vadd.s32 %v1009, %v1007
  %v1011 = vsel %vm589, %v841, 2147483647
  %v1012 = vand.u32 %v1011, 65535
  %v1013 = vshra.s32 %v1011, 16
  %v1014 = vcvt.s32.f32 %v1012
  %v1015 = vcvt.s32.f32 %v1013
  %1016 = vmin.xlane.f32.xlu0 %v1015
  %v1017 = vpop.xlane.xlu0 %1016
  %vm1018 = vcmp.eq.f32.partialorder %v1015, %v1017
  %v1019 = vsel %vm1018, %v1014, inf
  %1020 = vmin.xlane.f32.xlu0 %v1019
  %v1021 = vpop.xlane.xlu0 %1020
  %v1022 = vcvt.f32.s32 %v1021
  %v1023 = vcvt.f32.s32 %v1017
  %v1024 = vshll.u32 %v1023, 16
  %v1025 = vadd.s32 %v1024, %v1022
  %v1026 = vsel %vm589, %v842, 2147483647
  %v1027 = vand.u32 %v1026, 65535
  %v1028 = vshra.s32 %v1026, 16
  %v1029 = vcvt.s32.f32 %v1027
  %v1030 = vcvt.s32.f32 %v1028
  %1031 = vmin.xlane.f32.xlu0 %v1030
  %v1032 = vpop.xlane.xlu0 %1031
  %vm1033 = vcmp.eq.f32.partialorder %v1030, %v1032
  %v1034 = vsel %vm1033, %v1029, inf
  %1035 = vmin.xlane.f32.xlu0 %v1034
  %v1036 = vpop.xlane.xlu0 %1035
  %v1037 = vcvt.f32.s32 %v1036
  %v1038 = vcvt.f32.s32 %v1032
  %v1039 = vshll.u32 %v1038, 16
  %v1040 = vadd.s32 %v1039, %v1037
  %v1041 = vsel %vm589, %v843, 2147483647
  %v1042 = vand.u32 %v1041, 65535
  %v1043 = vshra.s32 %v1041, 16
  %v1044 = vcvt.s32.f32 %v1042
  %v1045 = vcvt.s32.f32 %v1043
  %1046 = vmin.xlane.f32.xlu0 %v1045
  %v1047 = vpop.xlane.xlu0 %1046
  %vm1048 = vcmp.eq.f32.partialorder %v1045, %v1047
  %v1049 = vsel %vm1048, %v1044, inf
  %1050 = vmin.xlane.f32.xlu0 %v1049
  %v1051 = vpop.xlane.xlu0 %1050
  %v1052 = vcvt.f32.s32 %v1051
  %v1053 = vcvt.f32.s32 %v1047
  %v1054 = vshll.u32 %v1053, 16
  %v1055 = vadd.s32 %v1054, %v1052
  %v1056 = vsel %vm589, %v844, 2147483647
  %v1057 = vand.u32 %v1056, 65535
  %v1058 = vshra.s32 %v1056, 16
  %v1059 = vcvt.s32.f32 %v1057
  %v1060 = vcvt.s32.f32 %v1058
  %1061 = vmin.xlane.f32.xlu0 %v1060
  %v1062 = vpop.xlane.xlu0 %1061
  %vm1063 = vcmp.eq.f32.partialorder %v1060, %v1062
  %v1064 = vsel %vm1063, %v1059, inf
  %1065 = vmin.xlane.f32.xlu0 %v1064
  %v1066 = vpop.xlane.xlu0 %1065
  %v1067 = vcvt.f32.s32 %v1066
  %v1068 = vcvt.f32.s32 %v1062
  %v1069 = vshll.u32 %v1068, 16
  %v1070 = vadd.s32 %v1069, %v1067
  %v1071 = vsel %vm589, %v845, 2147483647
  %v1072 = vand.u32 %v1071, 65535
  %v1073 = vshra.s32 %v1071, 16
  %v1074 = vcvt.s32.f32 %v1072
  %v1075 = vcvt.s32.f32 %v1073
  %1076 = vmin.xlane.f32.xlu0 %v1075
  %v1077 = vpop.xlane.xlu0 %1076
  %vm1078 = vcmp.eq.f32.partialorder %v1075, %v1077
  %v1079 = vsel %vm1078, %v1074, inf
  %1080 = vmin.xlane.f32.xlu0 %v1079
  %v1081 = vpop.xlane.xlu0 %1080
  %v1082 = vcvt.f32.s32 %v1081
  %v1083 = vcvt.f32.s32 %v1077
  %v1084 = vshll.u32 %v1083, 16
  %v1085 = vadd.s32 %v1084, %v1082
  %vm1086 = vcmp.eq.s32.totalorder %v562, %v860
  %vm1087 = vcmp.eq.s32.totalorder %v562, %v875
  %vm1088 = vcmp.eq.s32.totalorder %v562, %v890
  %vm1089 = vcmp.eq.s32.totalorder %v562, %v905
  %vm1090 = vcmp.eq.s32.totalorder %v562, %v920
  %vm1091 = vcmp.eq.s32.totalorder %v562, %v935
  %vm1092 = vcmp.eq.s32.totalorder %v562, %v950
  %vm1093 = vcmp.eq.s32.totalorder %v562, %v965
  %vm1094 = vcmp.eq.s32.totalorder %v562, %v980
  %vm1095 = vcmp.eq.s32.totalorder %v562, %v995
  %vm1096 = vcmp.eq.s32.totalorder %v562, %v1010
  %vm1097 = vcmp.eq.s32.totalorder %v562, %v1025
  %vm1098 = vcmp.eq.s32.totalorder %v562, %v1040
  %vm1099 = vcmp.eq.s32.totalorder %v562, %v1055
  %vm1100 = vcmp.eq.s32.totalorder %v562, %v1070
  %vm1101 = vcmp.eq.s32.totalorder %v562, %v1085
  %v1102 = vsel %vm1086, -inf, %v750
  %v1103 = vsel %vm1087, -inf, %v751
  %v1104 = vsel %vm1088, -inf, %v752
  %v1105 = vsel %vm1089, -inf, %v753
  %v1106 = vsel %vm1090, -inf, %v754
  %v1107 = vsel %vm1091, -inf, %v755
  %v1108 = vsel %vm1092, -inf, %v756
  %v1109 = vsel %vm1093, -inf, %v757
  %v1110 = vsel %vm1094, -inf, %v758
  %v1111 = vsel %vm1095, -inf, %v759
  %v1112 = vsel %vm1096, -inf, %v760
  %v1113 = vsel %vm1097, -inf, %v761
  %v1114 = vsel %vm1098, -inf, %v762
  %v1115 = vsel %vm1099, -inf, %v763
  %v1116 = vsel %vm1100, -inf, %v764
  %v1117 = vsel %vm1101, -inf, %v765
  %v1118 = vsel %vm589, %v1102, -inf
  %1119 = vmax.xlane.f32.xlu0 %v1118
  %v1120 = vpop.xlane.xlu0 %1119
  %v1121 = vsel %vm589, %v1103, -inf
  %1122 = vmax.xlane.f32.xlu0 %v1121
  %v1123 = vpop.xlane.xlu0 %1122
  %v1124 = vsel %vm589, %v1104, -inf
  %1125 = vmax.xlane.f32.xlu0 %v1124
  %v1126 = vpop.xlane.xlu0 %1125
  %v1127 = vsel %vm589, %v1105, -inf
  %1128 = vmax.xlane.f32.xlu0 %v1127
  %v1129 = vpop.xlane.xlu0 %1128
  %v1130 = vsel %vm589, %v1106, -inf
  %1131 = vmax.xlane.f32.xlu0 %v1130
  %v1132 = vpop.xlane.xlu0 %1131
  %v1133 = vsel %vm589, %v1107, -inf
  %1134 = vmax.xlane.f32.xlu0 %v1133
  %v1135 = vpop.xlane.xlu0 %1134
  %v1136 = vsel %vm589, %v1108, -inf
  %1137 = vmax.xlane.f32.xlu0 %v1136
  %v1138 = vpop.xlane.xlu0 %1137
  %v1139 = vsel %vm589, %v1109, -inf
  %1140 = vmax.xlane.f32.xlu0 %v1139
  %v1141 = vpop.xlane.xlu0 %1140
  %v1142 = vsel %vm589, %v1110, -inf
  %1143 = vmax.xlane.f32.xlu0 %v1142
  %v1144 = vpop.xlane.xlu0 %1143
  %v1145 = vsel %vm589, %v1111, -inf
  %1146 = vmax.xlane.f32.xlu0 %v1145
  %v1147 = vpop.xlane.xlu0 %1146
  %v1148 = vsel %vm589, %v1112, -inf
  %1149 = vmax.xlane.f32.xlu0 %v1148
  %v1150 = vpop.xlane.xlu0 %1149
  %v1151 = vsel %vm589, %v1113, -inf
  %1152 = vmax.xlane.f32.xlu0 %v1151
  %v1153 = vpop.xlane.xlu0 %1152
  %v1154 = vsel %vm589, %v1114, -inf
  %1155 = vmax.xlane.f32.xlu0 %v1154
  %v1156 = vpop.xlane.xlu0 %1155
  %v1157 = vsel %vm589, %v1115, -inf
  %1158 = vmax.xlane.f32.xlu0 %v1157
  %v1159 = vpop.xlane.xlu0 %1158
  %v1160 = vsel %vm589, %v1116, -inf
  %1161 = vmax.xlane.f32.xlu0 %v1160
  %v1162 = vpop.xlane.xlu0 %1161
  %v1163 = vsel %vm589, %v1117, -inf
  %1164 = vmax.xlane.f32.xlu0 %v1163
  %v1165 = vpop.xlane.xlu0 %1164
  %vm1166 = vcmp.eq.f32.partialorder %v1102, %v1120
  %vm1167 = vcmp.eq.f32.partialorder %v1103, %v1123
  %vm1168 = vcmp.eq.f32.partialorder %v1104, %v1126
  %vm1169 = vcmp.eq.f32.partialorder %v1105, %v1129
  %vm1170 = vcmp.eq.f32.partialorder %v1106, %v1132
  %vm1171 = vcmp.eq.f32.partialorder %v1107, %v1135
  %vm1172 = vcmp.eq.f32.partialorder %v1108, %v1138
  %vm1173 = vcmp.eq.f32.partialorder %v1109, %v1141
  %vm1174 = vcmp.eq.f32.partialorder %v1110, %v1144
  %vm1175 = vcmp.eq.f32.partialorder %v1111, %v1147
  %vm1176 = vcmp.eq.f32.partialorder %v1112, %v1150
  %vm1177 = vcmp.eq.f32.partialorder %v1113, %v1153
  %vm1178 = vcmp.eq.f32.partialorder %v1114, %v1156
  %vm1179 = vcmp.eq.f32.partialorder %v1115, %v1159
  %vm1180 = vcmp.eq.f32.partialorder %v1116, %v1162
  %vm1181 = vcmp.eq.f32.partialorder %v1117, %v1165
  %v1182 = vsel %vm1166, %v562, 64
  %v1183 = vsel %vm1167, %v562, 64
  %v1184 = vsel %vm1168, %v562, 64
  %v1185 = vsel %vm1169, %v562, 64
  %v1186 = vsel %vm1170, %v562, 64
  %v1187 = vsel %vm1171, %v562, 64
  %v1188 = vsel %vm1172, %v562, 64
  %v1189 = vsel %vm1173, %v562, 64
  %v1190 = vsel %vm1174, %v562, 64
  %v1191 = vsel %vm1175, %v562, 64
  %v1192 = vsel %vm1176, %v562, 64
  %v1193 = vsel %vm1177, %v562, 64
  %v1194 = vsel %vm1178, %v562, 64
  %v1195 = vsel %vm1179, %v562, 64
  %v1196 = vsel %vm1180, %v562, 64
  %v1197 = vsel %vm1181, %v562, 64
  %v1198 = vsel %vm589, %v1182, 2147483647
  %v1199 = vand.u32 %v1198, 65535
  %v1200 = vshra.s32 %v1198, 16
  %v1201 = vcvt.s32.f32 %v1199
  %v1202 = vcvt.s32.f32 %v1200
  %1203 = vmin.xlane.f32.xlu0 %v1202
  %v1204 = vpop.xlane.xlu0 %1203
  %vm1205 = vcmp.eq.f32.partialorder %v1202, %v1204
  %v1206 = vsel %vm1205, %v1201, inf
  %1207 = vmin.xlane.f32.xlu0 %v1206
  %v1208 = vpop.xlane.xlu0 %1207
  %v1209 = vcvt.f32.s32 %v1208
  %v1210 = vcvt.f32.s32 %v1204
  %v1211 = vshll.u32 %v1210, 16
  %v1212 = vadd.s32 %v1211, %v1209
  %v1213 = vsel %vm589, %v1183, 2147483647
  %v1214 = vand.u32 %v1213, 65535
  %v1215 = vshra.s32 %v1213, 16
  %v1216 = vcvt.s32.f32 %v1214
  %v1217 = vcvt.s32.f32 %v1215
  %1218 = vmin.xlane.f32.xlu0 %v1217
  %v1219 = vpop.xlane.xlu0 %1218
  %vm1220 = vcmp.eq.f32.partialorder %v1217, %v1219
  %v1221 = vsel %vm1220, %v1216, inf
  %1222 = vmin.xlane.f32.xlu0 %v1221
  %v1223 = vpop.xlane.xlu0 %1222
  %v1224 = vcvt.f32.s32 %v1223
  %v1225 = vcvt.f32.s32 %v1219
  %v1226 = vshll.u32 %v1225, 16
  %v1227 = vadd.s32 %v1226, %v1224
  %v1228 = vsel %vm589, %v1184, 2147483647
  %v1229 = vand.u32 %v1228, 65535
  %v1230 = vshra.s32 %v1228, 16
  %v1231 = vcvt.s32.f32 %v1229
  %v1232 = vcvt.s32.f32 %v1230
  %1233 = vmin.xlane.f32.xlu0 %v1232
  %v1234 = vpop.xlane.xlu0 %1233
  %vm1235 = vcmp.eq.f32.partialorder %v1232, %v1234
  %v1236 = vsel %vm1235, %v1231, inf
  %1237 = vmin.xlane.f32.xlu0 %v1236
  %v1238 = vpop.xlane.xlu0 %1237
  %v1239 = vcvt.f32.s32 %v1238
  %v1240 = vcvt.f32.s32 %v1234
  %v1241 = vshll.u32 %v1240, 16
  %v1242 = vadd.s32 %v1241, %v1239
  %v1243 = vsel %vm589, %v1185, 2147483647
  %v1244 = vand.u32 %v1243, 65535
  %v1245 = vshra.s32 %v1243, 16
  %v1246 = vcvt.s32.f32 %v1244
  %v1247 = vcvt.s32.f32 %v1245
  %1248 = vmin.xlane.f32.xlu0 %v1247
  %v1249 = vpop.xlane.xlu0 %1248
  %vm1250 = vcmp.eq.f32.partialorder %v1247, %v1249
  %v1251 = vsel %vm1250, %v1246, inf
  %1252 = vmin.xlane.f32.xlu0 %v1251
  %v1253 = vpop.xlane.xlu0 %1252
  %v1254 = vcvt.f32.s32 %v1253
  %v1255 = vcvt.f32.s32 %v1249
  %v1256 = vshll.u32 %v1255, 16
  %v1257 = vadd.s32 %v1256, %v1254
  %v1258 = vsel %vm589, %v1186, 2147483647
  %v1259 = vand.u32 %v1258, 65535
  %v1260 = vshra.s32 %v1258, 16
  %v1261 = vcvt.s32.f32 %v1259
  %v1262 = vcvt.s32.f32 %v1260
  %1263 = vmin.xlane.f32.xlu0 %v1262
  %v1264 = vpop.xlane.xlu0 %1263
  %vm1265 = vcmp.eq.f32.partialorder %v1262, %v1264
  %v1266 = vsel %vm1265, %v1261, inf
  %1267 = vmin.xlane.f32.xlu0 %v1266
  %v1268 = vpop.xlane.xlu0 %1267
  %v1269 = vcvt.f32.s32 %v1268
  %v1270 = vcvt.f32.s32 %v1264
  %v1271 = vshll.u32 %v1270, 16
  %v1272 = vadd.s32 %v1271, %v1269
  %v1273 = vsel %vm589, %v1187, 2147483647
  %v1274 = vand.u32 %v1273, 65535
  %v1275 = vshra.s32 %v1273, 16
  %v1276 = vcvt.s32.f32 %v1274
  %v1277 = vcvt.s32.f32 %v1275
  %1278 = vmin.xlane.f32.xlu0 %v1277
  %v1279 = vpop.xlane.xlu0 %1278
  %vm1280 = vcmp.eq.f32.partialorder %v1277, %v1279
  %v1281 = vsel %vm1280, %v1276, inf
  %1282 = vmin.xlane.f32.xlu0 %v1281
  %v1283 = vpop.xlane.xlu0 %1282
  %v1284 = vcvt.f32.s32 %v1283
  %v1285 = vcvt.f32.s32 %v1279
  %v1286 = vshll.u32 %v1285, 16
  %v1287 = vadd.s32 %v1286, %v1284
  %v1288 = vsel %vm589, %v1188, 2147483647
  %v1289 = vand.u32 %v1288, 65535
  %v1290 = vshra.s32 %v1288, 16
  %v1291 = vcvt.s32.f32 %v1289
  %v1292 = vcvt.s32.f32 %v1290
  %1293 = vmin.xlane.f32.xlu0 %v1292
  %v1294 = vpop.xlane.xlu0 %1293
  %vm1295 = vcmp.eq.f32.partialorder %v1292, %v1294
  %v1296 = vsel %vm1295, %v1291, inf
  %1297 = vmin.xlane.f32.xlu0 %v1296
  %v1298 = vpop.xlane.xlu0 %1297
  %v1299 = vcvt.f32.s32 %v1298
  %v1300 = vcvt.f32.s32 %v1294
  %v1301 = vshll.u32 %v1300, 16
  %v1302 = vadd.s32 %v1301, %v1299
  %v1303 = vsel %vm589, %v1189, 2147483647
  %v1304 = vand.u32 %v1303, 65535
  %v1305 = vshra.s32 %v1303, 16
  %v1306 = vcvt.s32.f32 %v1304
  %v1307 = vcvt.s32.f32 %v1305
  %1308 = vmin.xlane.f32.xlu0 %v1307
  %v1309 = vpop.xlane.xlu0 %1308
  %vm1310 = vcmp.eq.f32.partialorder %v1307, %v1309
  %v1311 = vsel %vm1310, %v1306, inf
  %1312 = vmin.xlane.f32.xlu0 %v1311
  %v1313 = vpop.xlane.xlu0 %1312
  %v1314 = vcvt.f32.s32 %v1313
  %v1315 = vcvt.f32.s32 %v1309
  %v1316 = vshll.u32 %v1315, 16
  %v1317 = vadd.s32 %v1316, %v1314
  %v1318 = vsel %vm589, %v1190, 2147483647
  %v1319 = vand.u32 %v1318, 65535
  %v1320 = vshra.s32 %v1318, 16
  %v1321 = vcvt.s32.f32 %v1319
  %v1322 = vcvt.s32.f32 %v1320
  %1323 = vmin.xlane.f32.xlu0 %v1322
  %v1324 = vpop.xlane.xlu0 %1323
  %vm1325 = vcmp.eq.f32.partialorder %v1322, %v1324
  %v1326 = vsel %vm1325, %v1321, inf
  %1327 = vmin.xlane.f32.xlu0 %v1326
  %v1328 = vpop.xlane.xlu0 %1327
  %v1329 = vcvt.f32.s32 %v1328
  %v1330 = vcvt.f32.s32 %v1324
  %v1331 = vshll.u32 %v1330, 16
  %v1332 = vadd.s32 %v1331, %v1329
  %v1333 = vsel %vm589, %v1191, 2147483647
  %v1334 = vand.u32 %v1333, 65535
  %v1335 = vshra.s32 %v1333, 16
  %v1336 = vcvt.s32.f32 %v1334
  %v1337 = vcvt.s32.f32 %v1335
  %1338 = vmin.xlane.f32.xlu0 %v1337
  %v1339 = vpop.xlane.xlu0 %1338
  %vm1340 = vcmp.eq.f32.partialorder %v1337, %v1339
  %v1341 = vsel %vm1340, %v1336, inf
  %1342 = vmin.xlane.f32.xlu0 %v1341
  %v1343 = vpop.xlane.xlu0 %1342
  %v1344 = vcvt.f32.s32 %v1343
  %v1345 = vcvt.f32.s32 %v1339
  %v1346 = vshll.u32 %v1345, 16
  %v1347 = vadd.s32 %v1346, %v1344
  %v1348 = vsel %vm589, %v1192, 2147483647
  %v1349 = vand.u32 %v1348, 65535
  %v1350 = vshra.s32 %v1348, 16
  %v1351 = vcvt.s32.f32 %v1349
  %v1352 = vcvt.s32.f32 %v1350
  %1353 = vmin.xlane.f32.xlu0 %v1352
  %v1354 = vpop.xlane.xlu0 %1353
  %vm1355 = vcmp.eq.f32.partialorder %v1352, %v1354
  %v1356 = vsel %vm1355, %v1351, inf
  %1357 = vmin.xlane.f32.xlu0 %v1356
  %v1358 = vpop.xlane.xlu0 %1357
  %v1359 = vcvt.f32.s32 %v1358
  %v1360 = vcvt.f32.s32 %v1354
  %v1361 = vshll.u32 %v1360, 16
  %v1362 = vadd.s32 %v1361, %v1359
  %v1363 = vsel %vm589, %v1193, 2147483647
  %v1364 = vand.u32 %v1363, 65535
  %v1365 = vshra.s32 %v1363, 16
  %v1366 = vcvt.s32.f32 %v1364
  %v1367 = vcvt.s32.f32 %v1365
  %1368 = vmin.xlane.f32.xlu0 %v1367
  %v1369 = vpop.xlane.xlu0 %1368
  %vm1370 = vcmp.eq.f32.partialorder %v1367, %v1369
  %v1371 = vsel %vm1370, %v1366, inf
  %1372 = vmin.xlane.f32.xlu0 %v1371
  %v1373 = vpop.xlane.xlu0 %1372
  %v1374 = vcvt.f32.s32 %v1373
  %v1375 = vcvt.f32.s32 %v1369
  %v1376 = vshll.u32 %v1375, 16
  %v1377 = vadd.s32 %v1376, %v1374
  %v1378 = vsel %vm589, %v1194, 2147483647
  %v1379 = vand.u32 %v1378, 65535
  %v1380 = vshra.s32 %v1378, 16
  %v1381 = vcvt.s32.f32 %v1379
  %v1382 = vcvt.s32.f32 %v1380
  %1383 = vmin.xlane.f32.xlu0 %v1382
  %v1384 = vpop.xlane.xlu0 %1383
  %vm1385 = vcmp.eq.f32.partialorder %v1382, %v1384
  %v1386 = vsel %vm1385, %v1381, inf
  %1387 = vmin.xlane.f32.xlu0 %v1386
  %v1388 = vpop.xlane.xlu0 %1387
  %v1389 = vcvt.f32.s32 %v1388
  %v1390 = vcvt.f32.s32 %v1384
  %v1391 = vshll.u32 %v1390, 16
  %v1392 = vadd.s32 %v1391, %v1389
  %v1393 = vsel %vm589, %v1195, 2147483647
  %v1394 = vand.u32 %v1393, 65535
  %v1395 = vshra.s32 %v1393, 16
  %v1396 = vcvt.s32.f32 %v1394
  %v1397 = vcvt.s32.f32 %v1395
  %1398 = vmin.xlane.f32.xlu0 %v1397
  %v1399 = vpop.xlane.xlu0 %1398
  %vm1400 = vcmp.eq.f32.partialorder %v1397, %v1399
  %v1401 = vsel %vm1400, %v1396, inf
  %1402 = vmin.xlane.f32.xlu0 %v1401
  %v1403 = vpop.xlane.xlu0 %1402
  %v1404 = vcvt.f32.s32 %v1403
  %v1405 = vcvt.f32.s32 %v1399
  %v1406 = vshll.u32 %v1405, 16
  %v1407 = vadd.s32 %v1406, %v1404
  %v1408 = vsel %vm589, %v1196, 2147483647
  %v1409 = vand.u32 %v1408, 65535
  %v1410 = vshra.s32 %v1408, 16
  %v1411 = vcvt.s32.f32 %v1409
  %v1412 = vcvt.s32.f32 %v1410
  %1413 = vmin.xlane.f32.xlu0 %v1412
  %v1414 = vpop.xlane.xlu0 %1413
  %vm1415 = vcmp.eq.f32.partialorder %v1412, %v1414
  %v1416 = vsel %vm1415, %v1411, inf
  %1417 = vmin.xlane.f32.xlu0 %v1416
  %v1418 = vpop.xlane.xlu0 %1417
  %v1419 = vcvt.f32.s32 %v1418
  %v1420 = vcvt.f32.s32 %v1414
  %v1421 = vshll.u32 %v1420, 16
  %v1422 = vadd.s32 %v1421, %v1419
  %v1423 = vsel %vm589, %v1197, 2147483647
  %v1424 = vand.u32 %v1423, 65535
  %v1425 = vshra.s32 %v1423, 16
  %v1426 = vcvt.s32.f32 %v1424
  %v1427 = vcvt.s32.f32 %v1425
  %1428 = vmin.xlane.f32.xlu0 %v1427
  %v1429 = vpop.xlane.xlu0 %1428
  %vm1430 = vcmp.eq.f32.partialorder %v1427, %v1429
  %v1431 = vsel %vm1430, %v1426, inf
  %1432 = vmin.xlane.f32.xlu0 %v1431
  %v1433 = vpop.xlane.xlu0 %1432
  %v1434 = vcvt.f32.s32 %v1433
  %v1435 = vcvt.f32.s32 %v1429
  %v1436 = vshll.u32 %v1435, 16
  %v1437 = vadd.s32 %v1436, %v1434
  %vm1438 = vcmp.eq.s32.totalorder %v562, %v1212
  %vm1439 = vcmp.eq.s32.totalorder %v562, %v1227
  %vm1440 = vcmp.eq.s32.totalorder %v562, %v1242
  %vm1441 = vcmp.eq.s32.totalorder %v562, %v1257
  %vm1442 = vcmp.eq.s32.totalorder %v562, %v1272
  %vm1443 = vcmp.eq.s32.totalorder %v562, %v1287
  %vm1444 = vcmp.eq.s32.totalorder %v562, %v1302
  %vm1445 = vcmp.eq.s32.totalorder %v562, %v1317
  %vm1446 = vcmp.eq.s32.totalorder %v562, %v1332
  %vm1447 = vcmp.eq.s32.totalorder %v562, %v1347
  %vm1448 = vcmp.eq.s32.totalorder %v562, %v1362
  %vm1449 = vcmp.eq.s32.totalorder %v562, %v1377
  %vm1450 = vcmp.eq.s32.totalorder %v562, %v1392
  %vm1451 = vcmp.eq.s32.totalorder %v562, %v1407
  %vm1452 = vcmp.eq.s32.totalorder %v562, %v1422
  %vm1453 = vcmp.eq.s32.totalorder %v562, %v1437
  %v1454 = vsel %vm1438, -inf, %v1102
  %v1455 = vsel %vm1439, -inf, %v1103
  %v1456 = vsel %vm1440, -inf, %v1104
  %v1457 = vsel %vm1441, -inf, %v1105
  %v1458 = vsel %vm1442, -inf, %v1106
  %v1459 = vsel %vm1443, -inf, %v1107
  %v1460 = vsel %vm1444, -inf, %v1108
  %v1461 = vsel %vm1445, -inf, %v1109
  %v1462 = vsel %vm1446, -inf, %v1110
  %v1463 = vsel %vm1447, -inf, %v1111
  %v1464 = vsel %vm1448, -inf, %v1112
  %v1465 = vsel %vm1449, -inf, %v1113
  %v1466 = vsel %vm1450, -inf, %v1114
  %v1467 = vsel %vm1451, -inf, %v1115
  %v1468 = vsel %vm1452, -inf, %v1116
  %v1469 = vsel %vm1453, -inf, %v1117
  %v1470 = vsel %vm589, %v1454, -inf
  %1471 = vmax.xlane.f32.xlu0 %v1470
  %v1472 = vpop.xlane.xlu0 %1471
  %v1473 = vsel %vm589, %v1455, -inf
  %1474 = vmax.xlane.f32.xlu0 %v1473
  %v1475 = vpop.xlane.xlu0 %1474
  %v1476 = vsel %vm589, %v1456, -inf
  %1477 = vmax.xlane.f32.xlu0 %v1476
  %v1478 = vpop.xlane.xlu0 %1477
  %v1479 = vsel %vm589, %v1457, -inf
  %1480 = vmax.xlane.f32.xlu0 %v1479
  %v1481 = vpop.xlane.xlu0 %1480
  %v1482 = vsel %vm589, %v1458, -inf
  %1483 = vmax.xlane.f32.xlu0 %v1482
  %v1484 = vpop.xlane.xlu0 %1483
  %v1485 = vsel %vm589, %v1459, -inf
  %1486 = vmax.xlane.f32.xlu0 %v1485
  %v1487 = vpop.xlane.xlu0 %1486
  %v1488 = vsel %vm589, %v1460, -inf
  %1489 = vmax.xlane.f32.xlu0 %v1488
  %v1490 = vpop.xlane.xlu0 %1489
  %v1491 = vsel %vm589, %v1461, -inf
  %1492 = vmax.xlane.f32.xlu0 %v1491
  %v1493 = vpop.xlane.xlu0 %1492
  %v1494 = vsel %vm589, %v1462, -inf
  %1495 = vmax.xlane.f32.xlu0 %v1494
  %v1496 = vpop.xlane.xlu0 %1495
  %v1497 = vsel %vm589, %v1463, -inf
  %1498 = vmax.xlane.f32.xlu0 %v1497
  %v1499 = vpop.xlane.xlu0 %1498
  %v1500 = vsel %vm589, %v1464, -inf
  %1501 = vmax.xlane.f32.xlu0 %v1500
  %v1502 = vpop.xlane.xlu0 %1501
  %v1503 = vsel %vm589, %v1465, -inf
  %1504 = vmax.xlane.f32.xlu0 %v1503
  %v1505 = vpop.xlane.xlu0 %1504
  %v1506 = vsel %vm589, %v1466, -inf
  %1507 = vmax.xlane.f32.xlu0 %v1506
  %v1508 = vpop.xlane.xlu0 %1507
  %v1509 = vsel %vm589, %v1467, -inf
  %1510 = vmax.xlane.f32.xlu0 %v1509
  %v1511 = vpop.xlane.xlu0 %1510
  %v1512 = vsel %vm589, %v1468, -inf
  %1513 = vmax.xlane.f32.xlu0 %v1512
  %v1514 = vpop.xlane.xlu0 %1513
  %v1515 = vsel %vm589, %v1469, -inf
  %1516 = vmax.xlane.f32.xlu0 %v1515
  %v1517 = vpop.xlane.xlu0 %1516
  %vm1518 = vcmp.eq.f32.partialorder %v1454, %v1472
  %vm1519 = vcmp.eq.f32.partialorder %v1455, %v1475
  %vm1520 = vcmp.eq.f32.partialorder %v1456, %v1478
  %vm1521 = vcmp.eq.f32.partialorder %v1457, %v1481
  %vm1522 = vcmp.eq.f32.partialorder %v1458, %v1484
  %vm1523 = vcmp.eq.f32.partialorder %v1459, %v1487
  %vm1524 = vcmp.eq.f32.partialorder %v1460, %v1490
  %vm1525 = vcmp.eq.f32.partialorder %v1461, %v1493
  %vm1526 = vcmp.eq.f32.partialorder %v1462, %v1496
  %vm1527 = vcmp.eq.f32.partialorder %v1463, %v1499
  %vm1528 = vcmp.eq.f32.partialorder %v1464, %v1502
  %vm1529 = vcmp.eq.f32.partialorder %v1465, %v1505
  %vm1530 = vcmp.eq.f32.partialorder %v1466, %v1508
  %vm1531 = vcmp.eq.f32.partialorder %v1467, %v1511
  %vm1532 = vcmp.eq.f32.partialorder %v1468, %v1514
  %vm1533 = vcmp.eq.f32.partialorder %v1469, %v1517
  %v1534 = vsel %vm1518, %v562, 64
  %v1535 = vsel %vm1519, %v562, 64
  %v1536 = vsel %vm1520, %v562, 64
  %v1537 = vsel %vm1521, %v562, 64
  %v1538 = vsel %vm1522, %v562, 64
  %v1539 = vsel %vm1523, %v562, 64
  %v1540 = vsel %vm1524, %v562, 64
  %v1541 = vsel %vm1525, %v562, 64
  %v1542 = vsel %vm1526, %v562, 64
  %v1543 = vsel %vm1527, %v562, 64
  %v1544 = vsel %vm1528, %v562, 64
  %v1545 = vsel %vm1529, %v562, 64
  %v1546 = vsel %vm1530, %v562, 64
  %v1547 = vsel %vm1531, %v562, 64
  %v1548 = vsel %vm1532, %v562, 64
  %v1549 = vsel %vm1533, %v562, 64
  %v1550 = vsel %vm589, %v1534, 2147483647
  %v1551 = vand.u32 %v1550, 65535
  %v1552 = vshra.s32 %v1550, 16
  %v1553 = vcvt.s32.f32 %v1551
  %v1554 = vcvt.s32.f32 %v1552
  %1555 = vmin.xlane.f32.xlu0 %v1554
  %v1556 = vpop.xlane.xlu0 %1555
  %vm1557 = vcmp.eq.f32.partialorder %v1554, %v1556
  %v1558 = vsel %vm1557, %v1553, inf
  %1559 = vmin.xlane.f32.xlu0 %v1558
  %v1560 = vpop.xlane.xlu0 %1559
  %v1561 = vcvt.f32.s32 %v1560
  %v1562 = vcvt.f32.s32 %v1556
  %v1563 = vshll.u32 %v1562, 16
  %v1564 = vadd.s32 %v1563, %v1561
  %v1565 = vsel %vm589, %v1535, 2147483647
  %v1566 = vand.u32 %v1565, 65535
  %v1567 = vshra.s32 %v1565, 16
  %v1568 = vcvt.s32.f32 %v1566
  %v1569 = vcvt.s32.f32 %v1567
  %1570 = vmin.xlane.f32.xlu0 %v1569
  %v1571 = vpop.xlane.xlu0 %1570
  %vm1572 = vcmp.eq.f32.partialorder %v1569, %v1571
  %v1573 = vsel %vm1572, %v1568, inf
  %1574 = vmin.xlane.f32.xlu0 %v1573
  %v1575 = vpop.xlane.xlu0 %1574
  %v1576 = vcvt.f32.s32 %v1575
  %v1577 = vcvt.f32.s32 %v1571
  %v1578 = vshll.u32 %v1577, 16
  %v1579 = vadd.s32 %v1578, %v1576
  %v1580 = vsel %vm589, %v1536, 2147483647
  %v1581 = vand.u32 %v1580, 65535
  %v1582 = vshra.s32 %v1580, 16
  %v1583 = vcvt.s32.f32 %v1581
  %v1584 = vcvt.s32.f32 %v1582
  %1585 = vmin.xlane.f32.xlu0 %v1584
  %v1586 = vpop.xlane.xlu0 %1585
  %vm1587 = vcmp.eq.f32.partialorder %v1584, %v1586
  %v1588 = vsel %vm1587, %v1583, inf
  %1589 = vmin.xlane.f32.xlu0 %v1588
  %v1590 = vpop.xlane.xlu0 %1589
  %v1591 = vcvt.f32.s32 %v1590
  %v1592 = vcvt.f32.s32 %v1586
  %v1593 = vshll.u32 %v1592, 16
  %v1594 = vadd.s32 %v1593, %v1591
  %v1595 = vsel %vm589, %v1537, 2147483647
  %v1596 = vand.u32 %v1595, 65535
  %v1597 = vshra.s32 %v1595, 16
  %v1598 = vcvt.s32.f32 %v1596
  %v1599 = vcvt.s32.f32 %v1597
  %1600 = vmin.xlane.f32.xlu0 %v1599
  %v1601 = vpop.xlane.xlu0 %1600
  %vm1602 = vcmp.eq.f32.partialorder %v1599, %v1601
  %v1603 = vsel %vm1602, %v1598, inf
  %1604 = vmin.xlane.f32.xlu0 %v1603
  %v1605 = vpop.xlane.xlu0 %1604
  %v1606 = vcvt.f32.s32 %v1605
  %v1607 = vcvt.f32.s32 %v1601
  %v1608 = vshll.u32 %v1607, 16
  %v1609 = vadd.s32 %v1608, %v1606
  %v1610 = vsel %vm589, %v1538, 2147483647
  %v1611 = vand.u32 %v1610, 65535
  %v1612 = vshra.s32 %v1610, 16
  %v1613 = vcvt.s32.f32 %v1611
  %v1614 = vcvt.s32.f32 %v1612
  %1615 = vmin.xlane.f32.xlu0 %v1614
  %v1616 = vpop.xlane.xlu0 %1615
  %vm1617 = vcmp.eq.f32.partialorder %v1614, %v1616
  %v1618 = vsel %vm1617, %v1613, inf
  %1619 = vmin.xlane.f32.xlu0 %v1618
  %v1620 = vpop.xlane.xlu0 %1619
  %v1621 = vcvt.f32.s32 %v1620
  %v1622 = vcvt.f32.s32 %v1616
  %v1623 = vshll.u32 %v1622, 16
  %v1624 = vadd.s32 %v1623, %v1621
  %v1625 = vsel %vm589, %v1539, 2147483647
  %v1626 = vand.u32 %v1625, 65535
  %v1627 = vshra.s32 %v1625, 16
  %v1628 = vcvt.s32.f32 %v1626
  %v1629 = vcvt.s32.f32 %v1627
  %1630 = vmin.xlane.f32.xlu0 %v1629
  %v1631 = vpop.xlane.xlu0 %1630
  %vm1632 = vcmp.eq.f32.partialorder %v1629, %v1631
  %v1633 = vsel %vm1632, %v1628, inf
  %1634 = vmin.xlane.f32.xlu0 %v1633
  %v1635 = vpop.xlane.xlu0 %1634
  %v1636 = vcvt.f32.s32 %v1635
  %v1637 = vcvt.f32.s32 %v1631
  %v1638 = vshll.u32 %v1637, 16
  %v1639 = vadd.s32 %v1638, %v1636
  %v1640 = vsel %vm589, %v1540, 2147483647
  %v1641 = vand.u32 %v1640, 65535
  %v1642 = vshra.s32 %v1640, 16
  %v1643 = vcvt.s32.f32 %v1641
  %v1644 = vcvt.s32.f32 %v1642
  %1645 = vmin.xlane.f32.xlu0 %v1644
  %v1646 = vpop.xlane.xlu0 %1645
  %vm1647 = vcmp.eq.f32.partialorder %v1644, %v1646
  %v1648 = vsel %vm1647, %v1643, inf
  %1649 = vmin.xlane.f32.xlu0 %v1648
  %v1650 = vpop.xlane.xlu0 %1649
  %v1651 = vcvt.f32.s32 %v1650
  %v1652 = vcvt.f32.s32 %v1646
  %v1653 = vshll.u32 %v1652, 16
  %v1654 = vadd.s32 %v1653, %v1651
  %v1655 = vsel %vm589, %v1541, 2147483647
  %v1656 = vand.u32 %v1655, 65535
  %v1657 = vshra.s32 %v1655, 16
  %v1658 = vcvt.s32.f32 %v1656
  %v1659 = vcvt.s32.f32 %v1657
  %1660 = vmin.xlane.f32.xlu0 %v1659
  %v1661 = vpop.xlane.xlu0 %1660
  %vm1662 = vcmp.eq.f32.partialorder %v1659, %v1661
  %v1663 = vsel %vm1662, %v1658, inf
  %1664 = vmin.xlane.f32.xlu0 %v1663
  %v1665 = vpop.xlane.xlu0 %1664
  %v1666 = vcvt.f32.s32 %v1665
  %v1667 = vcvt.f32.s32 %v1661
  %v1668 = vshll.u32 %v1667, 16
  %v1669 = vadd.s32 %v1668, %v1666
  %v1670 = vsel %vm589, %v1542, 2147483647
  %v1671 = vand.u32 %v1670, 65535
  %v1672 = vshra.s32 %v1670, 16
  %v1673 = vcvt.s32.f32 %v1671
  %v1674 = vcvt.s32.f32 %v1672
  %1675 = vmin.xlane.f32.xlu0 %v1674
  %v1676 = vpop.xlane.xlu0 %1675
  %vm1677 = vcmp.eq.f32.partialorder %v1674, %v1676
  %v1678 = vsel %vm1677, %v1673, inf
  %1679 = vmin.xlane.f32.xlu0 %v1678
  %v1680 = vpop.xlane.xlu0 %1679
  %v1681 = vcvt.f32.s32 %v1680
  %v1682 = vcvt.f32.s32 %v1676
  %v1683 = vshll.u32 %v1682, 16
  %v1684 = vadd.s32 %v1683, %v1681
  %v1685 = vsel %vm589, %v1543, 2147483647
  %v1686 = vand.u32 %v1685, 65535
  %v1687 = vshra.s32 %v1685, 16
  %v1688 = vcvt.s32.f32 %v1686
  %v1689 = vcvt.s32.f32 %v1687
  %1690 = vmin.xlane.f32.xlu0 %v1689
  %v1691 = vpop.xlane.xlu0 %1690
  %vm1692 = vcmp.eq.f32.partialorder %v1689, %v1691
  %v1693 = vsel %vm1692, %v1688, inf
  %1694 = vmin.xlane.f32.xlu0 %v1693
  %v1695 = vpop.xlane.xlu0 %1694
  %v1696 = vcvt.f32.s32 %v1695
  %v1697 = vcvt.f32.s32 %v1691
  %v1698 = vshll.u32 %v1697, 16
  %v1699 = vadd.s32 %v1698, %v1696
  %v1700 = vsel %vm589, %v1544, 2147483647
  %v1701 = vand.u32 %v1700, 65535
  %v1702 = vshra.s32 %v1700, 16
  %v1703 = vcvt.s32.f32 %v1701
  %v1704 = vcvt.s32.f32 %v1702
  %1705 = vmin.xlane.f32.xlu0 %v1704
  %v1706 = vpop.xlane.xlu0 %1705
  %vm1707 = vcmp.eq.f32.partialorder %v1704, %v1706
  %v1708 = vsel %vm1707, %v1703, inf
  %1709 = vmin.xlane.f32.xlu0 %v1708
  %v1710 = vpop.xlane.xlu0 %1709
  %v1711 = vcvt.f32.s32 %v1710
  %v1712 = vcvt.f32.s32 %v1706
  %v1713 = vshll.u32 %v1712, 16
  %v1714 = vadd.s32 %v1713, %v1711
  %v1715 = vsel %vm589, %v1545, 2147483647
  %v1716 = vand.u32 %v1715, 65535
  %v1717 = vshra.s32 %v1715, 16
  %v1718 = vcvt.s32.f32 %v1716
  %v1719 = vcvt.s32.f32 %v1717
  %1720 = vmin.xlane.f32.xlu0 %v1719
  %v1721 = vpop.xlane.xlu0 %1720
  %vm1722 = vcmp.eq.f32.partialorder %v1719, %v1721
  %v1723 = vsel %vm1722, %v1718, inf
  %1724 = vmin.xlane.f32.xlu0 %v1723
  %v1725 = vpop.xlane.xlu0 %1724
  %v1726 = vcvt.f32.s32 %v1725
  %v1727 = vcvt.f32.s32 %v1721
  %v1728 = vshll.u32 %v1727, 16
  %v1729 = vadd.s32 %v1728, %v1726
  %v1730 = vsel %vm589, %v1546, 2147483647
  %v1731 = vand.u32 %v1730, 65535
  %v1732 = vshra.s32 %v1730, 16
  %v1733 = vcvt.s32.f32 %v1731
  %v1734 = vcvt.s32.f32 %v1732
  %1735 = vmin.xlane.f32.xlu0 %v1734
  %v1736 = vpop.xlane.xlu0 %1735
  %vm1737 = vcmp.eq.f32.partialorder %v1734, %v1736
  %v1738 = vsel %vm1737, %v1733, inf
  %1739 = vmin.xlane.f32.xlu0 %v1738
  %v1740 = vpop.xlane.xlu0 %1739
  %v1741 = vcvt.f32.s32 %v1740
  %v1742 = vcvt.f32.s32 %v1736
  %v1743 = vshll.u32 %v1742, 16
  %v1744 = vadd.s32 %v1743, %v1741
  %v1745 = vsel %vm589, %v1547, 2147483647
  %v1746 = vand.u32 %v1745, 65535
  %v1747 = vshra.s32 %v1745, 16
  %v1748 = vcvt.s32.f32 %v1746
  %v1749 = vcvt.s32.f32 %v1747
  %1750 = vmin.xlane.f32.xlu0 %v1749
  %v1751 = vpop.xlane.xlu0 %1750
  %vm1752 = vcmp.eq.f32.partialorder %v1749, %v1751
  %v1753 = vsel %vm1752, %v1748, inf
  %1754 = vmin.xlane.f32.xlu0 %v1753
  %v1755 = vpop.xlane.xlu0 %1754
  %v1756 = vcvt.f32.s32 %v1755
  %v1757 = vcvt.f32.s32 %v1751
  %v1758 = vshll.u32 %v1757, 16
  %v1759 = vadd.s32 %v1758, %v1756
  %v1760 = vsel %vm589, %v1548, 2147483647
  %v1761 = vand.u32 %v1760, 65535
  %v1762 = vshra.s32 %v1760, 16
  %v1763 = vcvt.s32.f32 %v1761
  %v1764 = vcvt.s32.f32 %v1762
  %1765 = vmin.xlane.f32.xlu0 %v1764
  %v1766 = vpop.xlane.xlu0 %1765
  %vm1767 = vcmp.eq.f32.partialorder %v1764, %v1766
  %v1768 = vsel %vm1767, %v1763, inf
  %1769 = vmin.xlane.f32.xlu0 %v1768
  %v1770 = vpop.xlane.xlu0 %1769
  %v1771 = vcvt.f32.s32 %v1770
  %v1772 = vcvt.f32.s32 %v1766
  %v1773 = vshll.u32 %v1772, 16
  %v1774 = vadd.s32 %v1773, %v1771
  %v1775 = vsel %vm589, %v1549, 2147483647
  %v1776 = vand.u32 %v1775, 65535
  %v1777 = vshra.s32 %v1775, 16
  %v1778 = vcvt.s32.f32 %v1776
  %v1779 = vcvt.s32.f32 %v1777
  %1780 = vmin.xlane.f32.xlu0 %v1779
  %v1781 = vpop.xlane.xlu0 %1780
  %vm1782 = vcmp.eq.f32.partialorder %v1779, %v1781
  %v1783 = vsel %vm1782, %v1778, inf
  %1784 = vmin.xlane.f32.xlu0 %v1783
  %v1785 = vpop.xlane.xlu0 %1784
  %v1786 = vcvt.f32.s32 %v1785
  %v1787 = vcvt.f32.s32 %v1781
  %v1788 = vshll.u32 %v1787, 16
  %v1789 = vadd.s32 %v1788, %v1786
  %vm1790 = vcmp.eq.s32.totalorder %v562, %v1564
  %vm1791 = vcmp.eq.s32.totalorder %v562, %v1579
  %vm1792 = vcmp.eq.s32.totalorder %v562, %v1594
  %vm1793 = vcmp.eq.s32.totalorder %v562, %v1609
  %vm1794 = vcmp.eq.s32.totalorder %v562, %v1624
  %vm1795 = vcmp.eq.s32.totalorder %v562, %v1639
  %vm1796 = vcmp.eq.s32.totalorder %v562, %v1654
  %vm1797 = vcmp.eq.s32.totalorder %v562, %v1669
  %vm1798 = vcmp.eq.s32.totalorder %v562, %v1684
  %vm1799 = vcmp.eq.s32.totalorder %v562, %v1699
  %vm1800 = vcmp.eq.s32.totalorder %v562, %v1714
  %vm1801 = vcmp.eq.s32.totalorder %v562, %v1729
  %vm1802 = vcmp.eq.s32.totalorder %v562, %v1744
  %vm1803 = vcmp.eq.s32.totalorder %v562, %v1759
  %vm1804 = vcmp.eq.s32.totalorder %v562, %v1774
  %vm1805 = vcmp.eq.s32.totalorder %v562, %v1789
  %v1806 = vsel %vm1790, -inf, %v1454
  %v1807 = vsel %vm1791, -inf, %v1455
  %v1808 = vsel %vm1792, -inf, %v1456
  %v1809 = vsel %vm1793, -inf, %v1457
  %v1810 = vsel %vm1794, -inf, %v1458
  %v1811 = vsel %vm1795, -inf, %v1459
  %v1812 = vsel %vm1796, -inf, %v1460
  %v1813 = vsel %vm1797, -inf, %v1461
  %v1814 = vsel %vm1798, -inf, %v1462
  %v1815 = vsel %vm1799, -inf, %v1463
  %v1816 = vsel %vm1800, -inf, %v1464
  %v1817 = vsel %vm1801, -inf, %v1465
  %v1818 = vsel %vm1802, -inf, %v1466
  %v1819 = vsel %vm1803, -inf, %v1467
  %v1820 = vsel %vm1804, -inf, %v1468
  %v1821 = vsel %vm1805, -inf, %v1469
  %v1822 = vsel %vm589, %v1806, -inf
  %1823 = vmax.xlane.f32.xlu0 %v1822
  %v1824 = vpop.xlane.xlu0 %1823
  %v1825 = vsel %vm589, %v1807, -inf
  %1826 = vmax.xlane.f32.xlu0 %v1825
  %v1827 = vpop.xlane.xlu0 %1826
  %v1828 = vsel %vm589, %v1808, -inf
  %1829 = vmax.xlane.f32.xlu0 %v1828
  %v1830 = vpop.xlane.xlu0 %1829
  %v1831 = vsel %vm589, %v1809, -inf
  %1832 = vmax.xlane.f32.xlu0 %v1831
  %v1833 = vpop.xlane.xlu0 %1832
  %v1834 = vsel %vm589, %v1810, -inf
  %1835 = vmax.xlane.f32.xlu0 %v1834
  %v1836 = vpop.xlane.xlu0 %1835
  %v1837 = vsel %vm589, %v1811, -inf
  %1838 = vmax.xlane.f32.xlu0 %v1837
  %v1839 = vpop.xlane.xlu0 %1838
  %v1840 = vsel %vm589, %v1812, -inf
  %1841 = vmax.xlane.f32.xlu0 %v1840
  %v1842 = vpop.xlane.xlu0 %1841
  %v1843 = vsel %vm589, %v1813, -inf
  %1844 = vmax.xlane.f32.xlu0 %v1843
  %v1845 = vpop.xlane.xlu0 %1844
  %v1846 = vsel %vm589, %v1814, -inf
  %1847 = vmax.xlane.f32.xlu0 %v1846
  %v1848 = vpop.xlane.xlu0 %1847
  %v1849 = vsel %vm589, %v1815, -inf
  %1850 = vmax.xlane.f32.xlu0 %v1849
  %v1851 = vpop.xlane.xlu0 %1850
  %v1852 = vsel %vm589, %v1816, -inf
  %1853 = vmax.xlane.f32.xlu0 %v1852
  %v1854 = vpop.xlane.xlu0 %1853
  %v1855 = vsel %vm589, %v1817, -inf
  %1856 = vmax.xlane.f32.xlu0 %v1855
  %v1857 = vpop.xlane.xlu0 %1856
  %v1858 = vsel %vm589, %v1818, -inf
  %1859 = vmax.xlane.f32.xlu0 %v1858
  %v1860 = vpop.xlane.xlu0 %1859
  %v1861 = vsel %vm589, %v1819, -inf
  %1862 = vmax.xlane.f32.xlu0 %v1861
  %v1863 = vpop.xlane.xlu0 %1862
  %v1864 = vsel %vm589, %v1820, -inf
  %1865 = vmax.xlane.f32.xlu0 %v1864
  %v1866 = vpop.xlane.xlu0 %1865
  %v1867 = vsel %vm589, %v1821, -inf
  %1868 = vmax.xlane.f32.xlu0 %v1867
  %v1869 = vpop.xlane.xlu0 %1868
  %vm1870 = vcmp.eq.f32.partialorder %v1806, %v1824
  %vm1871 = vcmp.eq.f32.partialorder %v1807, %v1827
  %vm1872 = vcmp.eq.f32.partialorder %v1808, %v1830
  %vm1873 = vcmp.eq.f32.partialorder %v1809, %v1833
  %vm1874 = vcmp.eq.f32.partialorder %v1810, %v1836
  %vm1875 = vcmp.eq.f32.partialorder %v1811, %v1839
  %vm1876 = vcmp.eq.f32.partialorder %v1812, %v1842
  %vm1877 = vcmp.eq.f32.partialorder %v1813, %v1845
  %vm1878 = vcmp.eq.f32.partialorder %v1814, %v1848
  %vm1879 = vcmp.eq.f32.partialorder %v1815, %v1851
  %vm1880 = vcmp.eq.f32.partialorder %v1816, %v1854
  %vm1881 = vcmp.eq.f32.partialorder %v1817, %v1857
  %vm1882 = vcmp.eq.f32.partialorder %v1818, %v1860
  %vm1883 = vcmp.eq.f32.partialorder %v1819, %v1863
  %vm1884 = vcmp.eq.f32.partialorder %v1820, %v1866
  %vm1885 = vcmp.eq.f32.partialorder %v1821, %v1869
  %v1886 = vsel %vm1870, %v562, 64
  %v1887 = vsel %vm1871, %v562, 64
  %v1888 = vsel %vm1872, %v562, 64
  %v1889 = vsel %vm1873, %v562, 64
  %v1890 = vsel %vm1874, %v562, 64
  %v1891 = vsel %vm1875, %v562, 64
  %v1892 = vsel %vm1876, %v562, 64
  %v1893 = vsel %vm1877, %v562, 64
  %v1894 = vsel %vm1878, %v562, 64
  %v1895 = vsel %vm1879, %v562, 64
  %v1896 = vsel %vm1880, %v562, 64
  %v1897 = vsel %vm1881, %v562, 64
  %v1898 = vsel %vm1882, %v562, 64
  %v1899 = vsel %vm1883, %v562, 64
  %v1900 = vsel %vm1884, %v562, 64
  %v1901 = vsel %vm1885, %v562, 64
  %v1902 = vsel %vm589, %v1886, 2147483647
  %v1903 = vand.u32 %v1902, 65535
  %v1904 = vshra.s32 %v1902, 16
  %v1905 = vcvt.s32.f32 %v1903
  %v1906 = vcvt.s32.f32 %v1904
  %1907 = vmin.xlane.f32.xlu0 %v1906
  %v1908 = vpop.xlane.xlu0 %1907
  %vm1909 = vcmp.eq.f32.partialorder %v1906, %v1908
  %v1910 = vsel %vm1909, %v1905, inf
  %1911 = vmin.xlane.f32.xlu0 %v1910
  %v1912 = vpop.xlane.xlu0 %1911
  %v1913 = vcvt.f32.s32 %v1912
  %v1914 = vcvt.f32.s32 %v1908
  %v1915 = vshll.u32 %v1914, 16
  %v1916 = vadd.s32 %v1915, %v1913
  %v1917 = vsel %vm589, %v1887, 2147483647
  %v1918 = vand.u32 %v1917, 65535
  %v1919 = vshra.s32 %v1917, 16
  %v1920 = vcvt.s32.f32 %v1918
  %v1921 = vcvt.s32.f32 %v1919
  %1922 = vmin.xlane.f32.xlu0 %v1921
  %v1923 = vpop.xlane.xlu0 %1922
  %vm1924 = vcmp.eq.f32.partialorder %v1921, %v1923
  %v1925 = vsel %vm1924, %v1920, inf
  %1926 = vmin.xlane.f32.xlu0 %v1925
  %v1927 = vpop.xlane.xlu0 %1926
  %v1928 = vcvt.f32.s32 %v1927
  %v1929 = vcvt.f32.s32 %v1923
  %v1930 = vshll.u32 %v1929, 16
  %v1931 = vadd.s32 %v1930, %v1928
  %v1932 = vsel %vm589, %v1888, 2147483647
  %v1933 = vand.u32 %v1932, 65535
  %v1934 = vshra.s32 %v1932, 16
  %v1935 = vcvt.s32.f32 %v1933
  %v1936 = vcvt.s32.f32 %v1934
  %1937 = vmin.xlane.f32.xlu0 %v1936
  %v1938 = vpop.xlane.xlu0 %1937
  %vm1939 = vcmp.eq.f32.partialorder %v1936, %v1938
  %v1940 = vsel %vm1939, %v1935, inf
  %1941 = vmin.xlane.f32.xlu0 %v1940
  %v1942 = vpop.xlane.xlu0 %1941
  %v1943 = vcvt.f32.s32 %v1942
  %v1944 = vcvt.f32.s32 %v1938
  %v1945 = vshll.u32 %v1944, 16
  %v1946 = vadd.s32 %v1945, %v1943
  %v1947 = vsel %vm589, %v1889, 2147483647
  %v1948 = vand.u32 %v1947, 65535
  %v1949 = vshra.s32 %v1947, 16
  %v1950 = vcvt.s32.f32 %v1948
  %v1951 = vcvt.s32.f32 %v1949
  %1952 = vmin.xlane.f32.xlu0 %v1951
  %v1953 = vpop.xlane.xlu0 %1952
  %vm1954 = vcmp.eq.f32.partialorder %v1951, %v1953
  %v1955 = vsel %vm1954, %v1950, inf
  %1956 = vmin.xlane.f32.xlu0 %v1955
  %v1957 = vpop.xlane.xlu0 %1956
  %v1958 = vcvt.f32.s32 %v1957
  %v1959 = vcvt.f32.s32 %v1953
  %v1960 = vshll.u32 %v1959, 16
  %v1961 = vadd.s32 %v1960, %v1958
  %v1962 = vsel %vm589, %v1890, 2147483647
  %v1963 = vand.u32 %v1962, 65535
  %v1964 = vshra.s32 %v1962, 16
  %v1965 = vcvt.s32.f32 %v1963
  %v1966 = vcvt.s32.f32 %v1964
  %1967 = vmin.xlane.f32.xlu0 %v1966
  %v1968 = vpop.xlane.xlu0 %1967
  %vm1969 = vcmp.eq.f32.partialorder %v1966, %v1968
  %v1970 = vsel %vm1969, %v1965, inf
  %1971 = vmin.xlane.f32.xlu0 %v1970
  %v1972 = vpop.xlane.xlu0 %1971
  %v1973 = vcvt.f32.s32 %v1972
  %v1974 = vcvt.f32.s32 %v1968
  %v1975 = vshll.u32 %v1974, 16
  %v1976 = vadd.s32 %v1975, %v1973
  %v1977 = vsel %vm589, %v1891, 2147483647
  %v1978 = vand.u32 %v1977, 65535
  %v1979 = vshra.s32 %v1977, 16
  %v1980 = vcvt.s32.f32 %v1978
  %v1981 = vcvt.s32.f32 %v1979
  %1982 = vmin.xlane.f32.xlu0 %v1981
  %v1983 = vpop.xlane.xlu0 %1982
  %vm1984 = vcmp.eq.f32.partialorder %v1981, %v1983
  %v1985 = vsel %vm1984, %v1980, inf
  %1986 = vmin.xlane.f32.xlu0 %v1985
  %v1987 = vpop.xlane.xlu0 %1986
  %v1988 = vcvt.f32.s32 %v1987
  %v1989 = vcvt.f32.s32 %v1983
  %v1990 = vshll.u32 %v1989, 16
  %v1991 = vadd.s32 %v1990, %v1988
  %v1992 = vsel %vm589, %v1892, 2147483647
  %v1993 = vand.u32 %v1992, 65535
  %v1994 = vshra.s32 %v1992, 16
  %v1995 = vcvt.s32.f32 %v1993
  %v1996 = vcvt.s32.f32 %v1994
  %1997 = vmin.xlane.f32.xlu0 %v1996
  %v1998 = vpop.xlane.xlu0 %1997
  %vm1999 = vcmp.eq.f32.partialorder %v1996, %v1998
  %v2000 = vsel %vm1999, %v1995, inf
  %2001 = vmin.xlane.f32.xlu0 %v2000
  %v2002 = vpop.xlane.xlu0 %2001
  %v2003 = vcvt.f32.s32 %v2002
  %v2004 = vcvt.f32.s32 %v1998
  %v2005 = vshll.u32 %v2004, 16
  %v2006 = vadd.s32 %v2005, %v2003
  %v2007 = vsel %vm589, %v1893, 2147483647
  %v2008 = vand.u32 %v2007, 65535
  %v2009 = vshra.s32 %v2007, 16
  %v2010 = vcvt.s32.f32 %v2008
  %v2011 = vcvt.s32.f32 %v2009
  %2012 = vmin.xlane.f32.xlu0 %v2011
  %v2013 = vpop.xlane.xlu0 %2012
  %vm2014 = vcmp.eq.f32.partialorder %v2011, %v2013
  %v2015 = vsel %vm2014, %v2010, inf
  %2016 = vmin.xlane.f32.xlu0 %v2015
  %v2017 = vpop.xlane.xlu0 %2016
  %v2018 = vcvt.f32.s32 %v2017
  %v2019 = vcvt.f32.s32 %v2013
  %v2020 = vshll.u32 %v2019, 16
  %v2021 = vadd.s32 %v2020, %v2018
  %v2022 = vsel %vm589, %v1894, 2147483647
  %v2023 = vand.u32 %v2022, 65535
  %v2024 = vshra.s32 %v2022, 16
  %v2025 = vcvt.s32.f32 %v2023
  %v2026 = vcvt.s32.f32 %v2024
  %2027 = vmin.xlane.f32.xlu0 %v2026
  %v2028 = vpop.xlane.xlu0 %2027
  %vm2029 = vcmp.eq.f32.partialorder %v2026, %v2028
  %v2030 = vsel %vm2029, %v2025, inf
  %2031 = vmin.xlane.f32.xlu0 %v2030
  %v2032 = vpop.xlane.xlu0 %2031
  %v2033 = vcvt.f32.s32 %v2032
  %v2034 = vcvt.f32.s32 %v2028
  %v2035 = vshll.u32 %v2034, 16
  %v2036 = vadd.s32 %v2035, %v2033
  %v2037 = vsel %vm589, %v1895, 2147483647
  %v2038 = vand.u32 %v2037, 65535
  %v2039 = vshra.s32 %v2037, 16
  %v2040 = vcvt.s32.f32 %v2038
  %v2041 = vcvt.s32.f32 %v2039
  %2042 = vmin.xlane.f32.xlu0 %v2041
  %v2043 = vpop.xlane.xlu0 %2042
  %vm2044 = vcmp.eq.f32.partialorder %v2041, %v2043
  %v2045 = vsel %vm2044, %v2040, inf
  %2046 = vmin.xlane.f32.xlu0 %v2045
  %v2047 = vpop.xlane.xlu0 %2046
  %v2048 = vcvt.f32.s32 %v2047
  %v2049 = vcvt.f32.s32 %v2043
  %v2050 = vshll.u32 %v2049, 16
  %v2051 = vadd.s32 %v2050, %v2048
  %v2052 = vsel %vm589, %v1896, 2147483647
  %v2053 = vand.u32 %v2052, 65535
  %v2054 = vshra.s32 %v2052, 16
  %v2055 = vcvt.s32.f32 %v2053
  %v2056 = vcvt.s32.f32 %v2054
  %2057 = vmin.xlane.f32.xlu0 %v2056
  %v2058 = vpop.xlane.xlu0 %2057
  %vm2059 = vcmp.eq.f32.partialorder %v2056, %v2058
  %v2060 = vsel %vm2059, %v2055, inf
  %2061 = vmin.xlane.f32.xlu0 %v2060
  %v2062 = vpop.xlane.xlu0 %2061
  %v2063 = vcvt.f32.s32 %v2062
  %v2064 = vcvt.f32.s32 %v2058
  %v2065 = vshll.u32 %v2064, 16
  %v2066 = vadd.s32 %v2065, %v2063
  %v2067 = vsel %vm589, %v1897, 2147483647
  %v2068 = vand.u32 %v2067, 65535
  %v2069 = vshra.s32 %v2067, 16
  %v2070 = vcvt.s32.f32 %v2068
  %v2071 = vcvt.s32.f32 %v2069
  %2072 = vmin.xlane.f32.xlu0 %v2071
  %v2073 = vpop.xlane.xlu0 %2072
  %vm2074 = vcmp.eq.f32.partialorder %v2071, %v2073
  %v2075 = vsel %vm2074, %v2070, inf
  %2076 = vmin.xlane.f32.xlu0 %v2075
  %v2077 = vpop.xlane.xlu0 %2076
  %v2078 = vcvt.f32.s32 %v2077
  %v2079 = vcvt.f32.s32 %v2073
  %v2080 = vshll.u32 %v2079, 16
  %v2081 = vadd.s32 %v2080, %v2078
  %v2082 = vsel %vm589, %v1898, 2147483647
  %v2083 = vand.u32 %v2082, 65535
  %v2084 = vshra.s32 %v2082, 16
  %v2085 = vcvt.s32.f32 %v2083
  %v2086 = vcvt.s32.f32 %v2084
  %2087 = vmin.xlane.f32.xlu0 %v2086
  %v2088 = vpop.xlane.xlu0 %2087
  %vm2089 = vcmp.eq.f32.partialorder %v2086, %v2088
  %v2090 = vsel %vm2089, %v2085, inf
  %2091 = vmin.xlane.f32.xlu0 %v2090
  %v2092 = vpop.xlane.xlu0 %2091
  %v2093 = vcvt.f32.s32 %v2092
  %v2094 = vcvt.f32.s32 %v2088
  %v2095 = vshll.u32 %v2094, 16
  %v2096 = vadd.s32 %v2095, %v2093
  %v2097 = vsel %vm589, %v1899, 2147483647
  %v2098 = vand.u32 %v2097, 65535
  %v2099 = vshra.s32 %v2097, 16
  %v2100 = vcvt.s32.f32 %v2098
  %v2101 = vcvt.s32.f32 %v2099
  %2102 = vmin.xlane.f32.xlu0 %v2101
  %v2103 = vpop.xlane.xlu0 %2102
  %vm2104 = vcmp.eq.f32.partialorder %v2101, %v2103
  %v2105 = vsel %vm2104, %v2100, inf
  %2106 = vmin.xlane.f32.xlu0 %v2105
  %v2107 = vpop.xlane.xlu0 %2106
  %v2108 = vcvt.f32.s32 %v2107
  %v2109 = vcvt.f32.s32 %v2103
  %v2110 = vshll.u32 %v2109, 16
  %v2111 = vadd.s32 %v2110, %v2108
  %v2112 = vsel %vm589, %v1900, 2147483647
  %v2113 = vand.u32 %v2112, 65535
  %v2114 = vshra.s32 %v2112, 16
  %v2115 = vcvt.s32.f32 %v2113
  %v2116 = vcvt.s32.f32 %v2114
  %2117 = vmin.xlane.f32.xlu0 %v2116
  %v2118 = vpop.xlane.xlu0 %2117
  %vm2119 = vcmp.eq.f32.partialorder %v2116, %v2118
  %v2120 = vsel %vm2119, %v2115, inf
  %2121 = vmin.xlane.f32.xlu0 %v2120
  %v2122 = vpop.xlane.xlu0 %2121
  %v2123 = vcvt.f32.s32 %v2122
  %v2124 = vcvt.f32.s32 %v2118
  %v2125 = vshll.u32 %v2124, 16
  %v2126 = vadd.s32 %v2125, %v2123
  %v2127 = vsel %vm589, %v1901, 2147483647
  %v2128 = vand.u32 %v2127, 65535
  %v2129 = vshra.s32 %v2127, 16
  %v2130 = vcvt.s32.f32 %v2128
  %v2131 = vcvt.s32.f32 %v2129
  %2132 = vmin.xlane.f32.xlu0 %v2131
  %v2133 = vpop.xlane.xlu0 %2132
  %vm2134 = vcmp.eq.f32.partialorder %v2131, %v2133
  %v2135 = vsel %vm2134, %v2130, inf
  %2136 = vmin.xlane.f32.xlu0 %v2135
  %v2137 = vpop.xlane.xlu0 %2136
  %v2138 = vcvt.f32.s32 %v2137
  %v2139 = vcvt.f32.s32 %v2133
  %v2140 = vshll.u32 %v2139, 16
  %v2141 = vadd.s32 %v2140, %v2138
  %vm2142 = vcmp.eq.s32.totalorder %v562, %v1916
  %vm2143 = vcmp.eq.s32.totalorder %v562, %v1931
  %vm2144 = vcmp.eq.s32.totalorder %v562, %v1946
  %vm2145 = vcmp.eq.s32.totalorder %v562, %v1961
  %vm2146 = vcmp.eq.s32.totalorder %v562, %v1976
  %vm2147 = vcmp.eq.s32.totalorder %v562, %v1991
  %vm2148 = vcmp.eq.s32.totalorder %v562, %v2006
  %vm2149 = vcmp.eq.s32.totalorder %v562, %v2021
  %vm2150 = vcmp.eq.s32.totalorder %v562, %v2036
  %vm2151 = vcmp.eq.s32.totalorder %v562, %v2051
  %vm2152 = vcmp.eq.s32.totalorder %v562, %v2066
  %vm2153 = vcmp.eq.s32.totalorder %v562, %v2081
  %vm2154 = vcmp.eq.s32.totalorder %v562, %v2096
  %vm2155 = vcmp.eq.s32.totalorder %v562, %v2111
  %vm2156 = vcmp.eq.s32.totalorder %v562, %v2126
  %vm2157 = vcmp.eq.s32.totalorder %v562, %v2141
  %v2158 = vsel %vm2142, -inf, %v1806
  %v2159 = vsel %vm2143, -inf, %v1807
  %v2160 = vsel %vm2144, -inf, %v1808
  %v2161 = vsel %vm2145, -inf, %v1809
  %v2162 = vsel %vm2146, -inf, %v1810
  %v2163 = vsel %vm2147, -inf, %v1811
  %v2164 = vsel %vm2148, -inf, %v1812
  %v2165 = vsel %vm2149, -inf, %v1813
  %v2166 = vsel %vm2150, -inf, %v1814
  %v2167 = vsel %vm2151, -inf, %v1815
  %v2168 = vsel %vm2152, -inf, %v1816
  %v2169 = vsel %vm2153, -inf, %v1817
  %v2170 = vsel %vm2154, -inf, %v1818
  %v2171 = vsel %vm2155, -inf, %v1819
  %v2172 = vsel %vm2156, -inf, %v1820
  %v2173 = vsel %vm2157, -inf, %v1821
  %vm2174 = vcmp.eq.f32.partialorder %v2158, -inf
  %vm2175 = vcmp.eq.f32.partialorder %v2159, -inf
  %vm2176 = vcmp.eq.f32.partialorder %v2160, -inf
  %vm2177 = vcmp.eq.f32.partialorder %v2161, -inf
  %vm2178 = vcmp.eq.f32.partialorder %v2162, -inf
  %vm2179 = vcmp.eq.f32.partialorder %v2163, -inf
  %vm2180 = vcmp.eq.f32.partialorder %v2164, -inf
  %vm2181 = vcmp.eq.f32.partialorder %v2165, -inf
  %vm2182 = vcmp.eq.f32.partialorder %v2166, -inf
  %vm2183 = vcmp.eq.f32.partialorder %v2167, -inf
  %vm2184 = vcmp.eq.f32.partialorder %v2168, -inf
  %vm2185 = vcmp.eq.f32.partialorder %v2169, -inf
  %vm2186 = vcmp.eq.f32.partialorder %v2170, -inf
  %vm2187 = vcmp.eq.f32.partialorder %v2171, -inf
  %vm2188 = vcmp.eq.f32.partialorder %v2172, -inf
  %vm2189 = vcmp.eq.f32.partialorder %v2173, -inf
  %v2190 = vsel %vm2174, %v750, 0.0
  %v2191 = vsel %vm2175, %v751, 0.0
  %v2192 = vsel %vm2176, %v752, 0.0
  %v2193 = vsel %vm2177, %v753, 0.0
  %v2194 = vsel %vm2178, %v754, 0.0
  %v2195 = vsel %vm2179, %v755, 0.0
  %v2196 = vsel %vm2180, %v756, 0.0
  %v2197 = vsel %vm2181, %v757, 0.0
  %v2198 = vsel %vm2182, %v758, 0.0
  %v2199 = vsel %vm2183, %v759, 0.0
  %v2200 = vsel %vm2184, %v760, 0.0
  %v2201 = vsel %vm2185, %v761, 0.0
  %v2202 = vsel %vm2186, %v762, 0.0
  %v2203 = vsel %vm2187, %v763, 0.0
  %v2204 = vsel %vm2188, %v764, 0.0
  %v2205 = vsel %vm2189, %v765, 0.0
  %vm2206 = vcmp.eq.s32.totalorder %v564, %v562
  %vm2207 = vcmp.eq.s32.totalorder %v565, %v562
  %vm2208 = vcmp.eq.s32.totalorder %v566, %v562
  %vm2209 = vcmp.eq.s32.totalorder %v567, %v562
  %vm2210 = vcmp.eq.s32.totalorder %v568, %v562
  %vm2211 = vcmp.eq.s32.totalorder %v569, %v562
  %vm2212 = vcmp.eq.s32.totalorder %v570, %v562
  %vm2213 = vcmp.eq.s32.totalorder %v571, %v562
  %v2214 = vsel %vm2206, 1.0, %v2190
  %v2215 = vsel %vm2207, 1.0, %v2191
  %v2216 = vsel %vm2208, 1.0, %v2192
  %v2217 = vsel %vm2209, 1.0, %v2193
  %v2218 = vsel %vm2210, 1.0, %v2194
  %v2219 = vsel %vm2211, 1.0, %v2195
  %v2220 = vsel %vm2212, 1.0, %v2196
  %v2221 = vsel %vm2213, 1.0, %v2197
  %v2222 = vsel %vm2206, 1.0, %v2198
  %v2223 = vsel %vm2207, 1.0, %v2199
  %v2224 = vsel %vm2208, 1.0, %v2200
  %v2225 = vsel %vm2209, 1.0, %v2201
  %v2226 = vsel %vm2210, 1.0, %v2202
  %v2227 = vsel %vm2211, 1.0, %v2203
  %v2228 = vsel %vm2212, 1.0, %v2204
  %v2229 = vsel %vm2213, 1.0, %v2205
  %v2230 = vsel %vm589, %v2214, 0.0
  %2231 = vadd.xlane.f32.xlu0 %v2230
  %v2232 = vpop.xlane.xlu0 %2231
  %v2233 = vsel %vm589, %v2215, 0.0
  %2234 = vadd.xlane.f32.xlu0 %v2233
  %v2235 = vpop.xlane.xlu0 %2234
  %v2236 = vsel %vm589, %v2216, 0.0
  %2237 = vadd.xlane.f32.xlu0 %v2236
  %v2238 = vpop.xlane.xlu0 %2237
  %v2239 = vsel %vm589, %v2217, 0.0
  %2240 = vadd.xlane.f32.xlu0 %v2239
  %v2241 = vpop.xlane.xlu0 %2240
  %v2242 = vsel %vm589, %v2218, 0.0
  %2243 = vadd.xlane.f32.xlu0 %v2242
  %v2244 = vpop.xlane.xlu0 %2243
  %v2245 = vsel %vm589, %v2219, 0.0
  %2246 = vadd.xlane.f32.xlu0 %v2245
  %v2247 = vpop.xlane.xlu0 %2246
  %v2248 = vsel %vm589, %v2220, 0.0
  %2249 = vadd.xlane.f32.xlu0 %v2248
  %v2250 = vpop.xlane.xlu0 %2249
  %v2251 = vsel %vm589, %v2221, 0.0
  %2252 = vadd.xlane.f32.xlu0 %v2251
  %v2253 = vpop.xlane.xlu0 %2252
  %v2254 = vsel %vm589, %v2222, 0.0
  %2255 = vadd.xlane.f32.xlu0 %v2254
  %v2256 = vpop.xlane.xlu0 %2255
  %v2257 = vsel %vm589, %v2223, 0.0
  %2258 = vadd.xlane.f32.xlu0 %v2257
  %v2259 = vpop.xlane.xlu0 %2258
  %v2260 = vsel %vm589, %v2224, 0.0
  %2261 = vadd.xlane.f32.xlu0 %v2260
  %v2262 = vpop.xlane.xlu0 %2261
  %v2263 = vsel %vm589, %v2225, 0.0
  %2264 = vadd.xlane.f32.xlu0 %v2263
  %v2265 = vpop.xlane.xlu0 %2264
  %v2266 = vsel %vm589, %v2226, 0.0
  %2267 = vadd.xlane.f32.xlu0 %v2266
  %v2268 = vpop.xlane.xlu0 %2267
  %v2269 = vsel %vm589, %v2227, 0.0
  %2270 = vadd.xlane.f32.xlu0 %v2269
  %v2271 = vpop.xlane.xlu0 %2270
  %v2272 = vsel %vm589, %v2228, 0.0
  %2273 = vadd.xlane.f32.xlu0 %v2272
  %v2274 = vpop.xlane.xlu0 %2273
  %v2275 = vsel %vm589, %v2229, 0.0
  %2276 = vadd.xlane.f32.xlu0 %v2275
  %v2277 = vpop.xlane.xlu0 %2276
  %v2278 = vmax.f32 %v2232, 1.0
  %v2279 = vmax.f32 %v2235, 1.0
  %v2280 = vmax.f32 %v2238, 1.0
  %v2281 = vmax.f32 %v2241, 1.0
  %v2282 = vmax.f32 %v2244, 1.0
  %v2283 = vmax.f32 %v2247, 1.0
  %v2284 = vmax.f32 %v2250, 1.0
  %v2285 = vmax.f32 %v2253, 1.0
  %v2286 = vmax.f32 %v2256, 1.0
  %v2287 = vmax.f32 %v2259, 1.0
  %v2288 = vmax.f32 %v2262, 1.0
  %v2289 = vmax.f32 %v2265, 1.0
  %v2290 = vmax.f32 %v2268, 1.0
  %v2291 = vmax.f32 %v2271, 1.0
  %v2292 = vmax.f32 %v2274, 1.0
  %v2293 = vmax.f32 %v2277, 1.0
  %v2294 = vrsqrt.pop %v2278
  %v2295 = vrsqrt.pop %v2279
  %v2296 = vrsqrt.pop %v2280
  %v2297 = vrsqrt.pop %v2281
  %v2298 = vrsqrt.pop %v2282
  %v2299 = vrsqrt.pop %v2283
  %v2300 = vrsqrt.pop %v2284
  %v2301 = vrsqrt.pop %v2285
  %v2302 = vrsqrt.pop %v2286
  %v2303 = vrsqrt.pop %v2287
  %v2304 = vrsqrt.pop %v2288
  %v2305 = vrsqrt.pop %v2289
  %v2306 = vrsqrt.pop %v2290
  %v2307 = vrsqrt.pop %v2291
  %v2308 = vrsqrt.pop %v2292
  %v2309 = vrsqrt.pop %v2293
  %v2310 = vmul.f32 %v2294, %v151
  %v2311 = vmul.f32 %v2295, %v156
  %v2312 = vmul.f32 %v2296, %v161
  %v2313 = vmul.f32 %v2297, %v166
  %v2314 = vmul.f32 %v2298, %v171
  %v2315 = vmul.f32 %v2299, %v176
  %v2316 = vmul.f32 %v2300, %v181
  %v2317 = vmul.f32 %v2301, %v186
  %v2318 = vmul.f32 %v2302, %v191
  %v2319 = vmul.f32 %v2303, %v196
  %v2320 = vmul.f32 %v2304, %v201
  %v2321 = vmul.f32 %v2305, %v206
  %v2322 = vmul.f32 %v2306, %v211
  %v2323 = vmul.f32 %v2307, %v216
  %v2324 = vmul.f32 %v2308, %v221
  %v2325 = vmul.f32 %v2309, %v226
  %v2327 = vsel %vm589, %v2214, 0
  %v2330 = vsel %vm589, %v2215, 0
  %v2333 = vsel %vm589, %v2216, 0
  %v2336 = vsel %vm589, %v2217, 0
  %v2339 = vsel %vm589, %v2218, 0
  %v2342 = vsel %vm589, %v2219, 0
  %v2345 = vsel %vm589, %v2220, 0
  %v2348 = vsel %vm589, %v2221, 0
  %2350 = vmatprep.subr.mxu0 0.0
  %2351 = vmatpush1.msra.mxu0 %v2310
  %2352 = vmatprep.subr.mxu0 0.0
  %2353 = vmatpush1.msra.mxu0 %v2311
  %2354 = vmatprep.subr.mxu0 0.0
  %2355 = vmatpush1.msra.mxu0 %v2312
  %2356 = vmatprep.subr.mxu0 0.0
  %2357 = vmatpush1.msra.mxu0 %v2313
  %2358 = vmatprep.subr.mxu0 0.0
  %2359 = vmatpush1.msra.mxu0 %v2314
  %2360 = vmatprep.subr.mxu0 0.0
  %2361 = vmatpush1.msra.mxu0 %v2315
  %2362 = vmatprep.subr.mxu0 0.0
  %2363 = vmatpush1.msra.mxu0 %v2316
  %2364 = vmatprep.subr.mxu0 0.0
  %2365 = vmatpush1.msra.mxu0 %v2317
  %2366 = vmatprep.subr.mxu0 0.0
  %2367 = vmatpush1.msra.mxu0 0.0
  %2368 = vmatprep.subr.mxu0 0.0
  %2369 = vmatpush1.msra.mxu0 0.0
  %2370 = vmatprep.subr.mxu0 0.0
  %2371 = vmatpush1.msra.mxu0 0.0
  %2372 = vmatprep.subr.mxu0 0.0
  %2373 = vmatpush1.msra.mxu0 0.0
  %2374 = vmatprep.subr.mxu0 0.0
  %2375 = vmatpush1.msra.mxu0 0.0
  %2376 = vmatprep.subr.mxu0 0.0
  %2377 = vmatpush1.msra.mxu0 0.0
  %2378 = vmatprep.subr.mxu0 0.0
  %2379 = vmatpush1.msra.mxu0 0.0
  %2380 = vmatprep.subr.mxu0 0.0
  %2381 = vmatpush1.msra.mxu0 0.0
  %2382 = vmatprep.subr.mxu0 0.0
  %2383 = vmatpush1.msra.mxu0 0.0
  %2384 = vmatprep.subr.mxu0 0.0
  %2385 = vmatpush1.msra.mxu0 0.0
  %2386 = vmatprep.subr.mxu0 0.0
  %2387 = vmatpush1.msra.mxu0 0.0
  %2388 = vmatprep.subr.mxu0 0.0
  %2389 = vmatpush1.msra.mxu0 0.0
  %2390 = vmatprep.subr.mxu0 0.0
  %2391 = vmatpush1.msra.mxu0 0.0
  %2392 = vmatprep.subr.mxu0 0.0
  %2393 = vmatpush1.msra.mxu0 0.0
  %2394 = vmatprep.subr.mxu0 0.0
  %2395 = vmatpush1.msra.mxu0 0.0
  %2396 = vmatprep.subr.mxu0 0.0
  %2397 = vmatpush1.msra.mxu0 0.0
  %2398 = vmatprep.subr.mxu0 0.0
  %2399 = vmatpush1.msra.mxu0 0.0
  %2400 = vmatprep.subr.mxu0 0.0
  %2401 = vmatpush1.msra.mxu0 0.0
  %2402 = vmatprep.subr.mxu0 0.0
  %2403 = vmatpush1.msra.mxu0 0.0
  %2404 = vmatprep.subr.mxu0 0.0
  %2405 = vmatpush1.msra.mxu0 0.0
  %2406 = vmatprep.subr.mxu0 0.0
  %2407 = vmatpush1.msra.mxu0 0.0
  %2408 = vmatprep.subr.mxu0 0.0
  %2409 = vmatpush1.msra.mxu0 0.0
  %2410 = vmatprep.subr.mxu0 0.0
  %2411 = vmatpush1.msra.mxu0 0.0
  %2412 = vmatprep.subr.mxu0 0.0
  %2413 = vmatpush1.msra.mxu0 0.0
  %2414 = vmatprep.mubr.f32.mxu0 0.0
  %2415 = vmatmul.mubr.f32.gmra.mrb[0].mxu0 %v2327
  %v2416 = vpop.f32.mrb[0].mxu0
  %v2417 = vadd.f32 0.0, %v2416
  %v2418 = vpop.f32.mrb[0].mxu0
  %2419 = vmatprep.mubr.f32.mxu0 0.0
  %2420 = vmatmul.mubr.f32.gmra.mrb[0].mxu0 %v2330
  %v2421 = vpop.f32.mrb[0].mxu0
  %v2422 = vadd.f32 0.0, %v2421
  %v2423 = vpop.f32.mrb[0].mxu0
  %2424 = vmatprep.mubr.f32.mxu0 0.0
  %2425 = vmatmul.mubr.f32.gmra.mrb[0].mxu0 %v2333
  %v2426 = vpop.f32.mrb[0].mxu0
  %v2427 = vadd.f32 0.0, %v2426
  %v2428 = vpop.f32.mrb[0].mxu0
  %2429 = vmatprep.mubr.f32.mxu0 0.0
  %2430 = vmatmul.mubr.f32.gmra.mrb[0].mxu0 %v2336
  %v2431 = vpop.f32.mrb[0].mxu0
  %v2432 = vadd.f32 0.0, %v2431
  %v2433 = vpop.f32.mrb[0].mxu0
  %2434 = vmatprep.mubr.f32.mxu0 0.0
  %2435 = vmatmul.mubr.f32.gmra.mrb[0].mxu0 %v2339
  %v2436 = vpop.f32.mrb[0].mxu0
  %v2437 = vadd.f32 0.0, %v2436
  %v2438 = vpop.f32.mrb[0].mxu0
  %2439 = vmatprep.mubr.f32.mxu0 0.0
  %2440 = vmatmul.mubr.f32.gmra.mrb[0].mxu0 %v2342
  %v2441 = vpop.f32.mrb[0].mxu0
  %v2442 = vadd.f32 0.0, %v2441
  %v2443 = vpop.f32.mrb[0].mxu0
  %2444 = vmatprep.mubr.f32.mxu0 0.0
  %2445 = vmatmul.mubr.f32.gmra.mrb[0].mxu0 %v2345
  %v2446 = vpop.f32.mrb[0].mxu0
  %v2447 = vadd.f32 0.0, %v2446
  %v2448 = vpop.f32.mrb[0].mxu0
  %2449 = vmatprep.mubr.f32.mxu0 0.0
  %2450 = vmatmul.mubr.f32.gmra.mrb[0].mxu0 %v2348
  %v2451 = vpop.f32.mrb[0].mxu0
  %v2452 = vadd.f32 0.0, %v2451
  %v2453 = vpop.f32.mrb[0].mxu0
  %2454 = vdwg.mxu0
  %v2456 = vsel %vm589, %v2222, 0
  %v2459 = vsel %vm589, %v2223, 0
  %v2462 = vsel %vm589, %v2224, 0
  %v2465 = vsel %vm589, %v2225, 0
  %v2468 = vsel %vm589, %v2226, 0
  %v2471 = vsel %vm589, %v2227, 0
  %v2474 = vsel %vm589, %v2228, 0
  %v2477 = vsel %vm589, %v2229, 0
  %2479 = vmatprep.subr.mxu0 0.0
  %2480 = vmatpush1.msra.mxu0 %v2318
  %2481 = vmatprep.subr.mxu0 0.0
  %2482 = vmatpush1.msra.mxu0 %v2319
  %2483 = vmatprep.subr.mxu0 0.0
  %2484 = vmatpush1.msra.mxu0 %v2320
  %2485 = vmatprep.subr.mxu0 0.0
  %2486 = vmatpush1.msra.mxu0 %v2321
  %2487 = vmatprep.subr.mxu0 0.0
  %2488 = vmatpush1.msra.mxu0 %v2322
  %2489 = vmatprep.subr.mxu0 0.0
  %2490 = vmatpush1.msra.mxu0 %v2323
  %2491 = vmatprep.subr.mxu0 0.0
  %2492 = vmatpush1.msra.mxu0 %v2324
  %2493 = vmatprep.subr.mxu0 0.0
  %2494 = vmatpush1.msra.mxu0 %v2325
  %2495 = vmatprep.subr.mxu0 0.0
  %2496 = vmatpush1.msra.mxu0 0.0
  %2497 = vmatprep.subr.mxu0 0.0
  %2498 = vmatpush1.msra.mxu0 0.0
  %2499 = vmatprep.subr.mxu0 0.0
  %2500 = vmatpush1.msra.mxu0 0.0
  %2501 = vmatprep.subr.mxu0 0.0
  %2502 = vmatpush1.msra.mxu0 0.0
  %2503 = vmatprep.subr.mxu0 0.0
  %2504 = vmatpush1.msra.mxu0 0.0
  %2505 = vmatprep.subr.mxu0 0.0
  %2506 = vmatpush1.msra.mxu0 0.0
  %2507 = vmatprep.subr.mxu0 0.0
  %2508 = vmatpush1.msra.mxu0 0.0
  %2509 = vmatprep.subr.mxu0 0.0
  %2510 = vmatpush1.msra.mxu0 0.0
  %2511 = vmatprep.subr.mxu0 0.0
  %2512 = vmatpush1.msra.mxu0 0.0
  %2513 = vmatprep.subr.mxu0 0.0
  %2514 = vmatpush1.msra.mxu0 0.0
  %2515 = vmatprep.subr.mxu0 0.0
  %2516 = vmatpush1.msra.mxu0 0.0
  %2517 = vmatprep.subr.mxu0 0.0
  %2518 = vmatpush1.msra.mxu0 0.0
  %2519 = vmatprep.subr.mxu0 0.0
  %2520 = vmatpush1.msra.mxu0 0.0
  %2521 = vmatprep.subr.mxu0 0.0
  %2522 = vmatpush1.msra.mxu0 0.0
  %2523 = vmatprep.subr.mxu0 0.0
  %2524 = vmatpush1.msra.mxu0 0.0
  %2525 = vmatprep.subr.mxu0 0.0
  %2526 = vmatpush1.msra.mxu0 0.0
  %2527 = vmatprep.subr.mxu0 0.0
  %2528 = vmatpush1.msra.mxu0 0.0
  %2529 = vmatprep.subr.mxu0 0.0
  %2530 = vmatpush1.msra.mxu0 0.0
  %2531 = vmatprep.subr.mxu0 0.0
  %2532 = vmatpush1.msra.mxu0 0.0
  %2533 = vmatprep.subr.mxu0 0.0
  %2534 = vmatpush1.msra.mxu0 0.0
  %2535 = vmatprep.subr.mxu0 0.0
  %2536 = vmatpush1.msra.mxu0 0.0
  %2537 = vmatprep.subr.mxu0 0.0
  %2538 = vmatpush1.msra.mxu0 0.0
  %2539 = vmatprep.subr.mxu0 0.0
  %2540 = vmatpush1.msra.mxu0 0.0
  %2541 = vmatprep.subr.mxu0 0.0
  %2542 = vmatpush1.msra.mxu0 0.0
  %2543 = vmatprep.mubr.f32.mxu0 0.0
  %2544 = vmatmul.mubr.f32.gmra.mrb[0].mxu0 %v2456
  %v2545 = vpop.f32.mrb[0].mxu0
  %v2546 = vadd.f32 0.0, %v2545
  %v2547 = vpop.f32.mrb[0].mxu0
  %2548 = vmatprep.mubr.f32.mxu0 0.0
  %2549 = vmatmul.mubr.f32.gmra.mrb[0].mxu0 %v2459
  %v2550 = vpop.f32.mrb[0].mxu0
  %v2551 = vadd.f32 0.0, %v2550
  %v2552 = vpop.f32.mrb[0].mxu0
  %2553 = vmatprep.mubr.f32.mxu0 0.0
  %2554 = vmatmul.mubr.f32.gmra.mrb[0].mxu0 %v2462
  %v2555 = vpop.f32.mrb[0].mxu0
  %v2556 = vadd.f32 0.0, %v2555
  %v2557 = vpop.f32.mrb[0].mxu0
  %2558 = vmatprep.mubr.f32.mxu0 0.0
  %2559 = vmatmul.mubr.f32.gmra.mrb[0].mxu0 %v2465
  %v2560 = vpop.f32.mrb[0].mxu0
  %v2561 = vadd.f32 0.0, %v2560
  %v2562 = vpop.f32.mrb[0].mxu0
  %2563 = vmatprep.mubr.f32.mxu0 0.0
  %2564 = vmatmul.mubr.f32.gmra.mrb[0].mxu0 %v2468
  %v2565 = vpop.f32.mrb[0].mxu0
  %v2566 = vadd.f32 0.0, %v2565
  %v2567 = vpop.f32.mrb[0].mxu0
  %2568 = vmatprep.mubr.f32.mxu0 0.0
  %2569 = vmatmul.mubr.f32.gmra.mrb[0].mxu0 %v2471
  %v2570 = vpop.f32.mrb[0].mxu0
  %v2571 = vadd.f32 0.0, %v2570
  %v2572 = vpop.f32.mrb[0].mxu0
  %2573 = vmatprep.mubr.f32.mxu0 0.0
  %2574 = vmatmul.mubr.f32.gmra.mrb[0].mxu0 %v2474
  %v2575 = vpop.f32.mrb[0].mxu0
  %v2576 = vadd.f32 0.0, %v2575
  %v2577 = vpop.f32.mrb[0].mxu0
  %2578 = vmatprep.mubr.f32.mxu0 0.0
  %2579 = vmatmul.mubr.f32.gmra.mrb[0].mxu0 %v2477
  %v2580 = vpop.f32.mrb[0].mxu0
  %v2581 = vadd.f32 0.0, %v2580
  %v2582 = vpop.f32.mrb[0].mxu0
  %2583 = vdwg.mxu0
  %v2584 = vmul.f32 %v2294, %v2417
  %v2585 = vmul.f32 %v2295, %v2422
  %v2586 = vmul.f32 %v2296, %v2427
  %v2587 = vmul.f32 %v2297, %v2432
  %v2588 = vmul.f32 %v2298, %v2437
  %v2589 = vmul.f32 %v2299, %v2442
  %v2590 = vmul.f32 %v2300, %v2447
  %v2591 = vmul.f32 %v2301, %v2452
  %v2592 = vmul.f32 %v2302, %v2546
  %v2593 = vmul.f32 %v2303, %v2551
  %v2594 = vmul.f32 %v2304, %v2556
  %v2595 = vmul.f32 %v2305, %v2561
  %v2596 = vmul.f32 %v2306, %v2566
  %v2597 = vmul.f32 %v2307, %v2571
  %v2598 = vmul.f32 %v2308, %v2576
  %v2599 = vmul.f32 %v2309, %v2581
  %v2600 = vld [vmem:[%s3] sm:$0x1]
  %v2602 = vlaneseq
  %v2603 = vshrl.u32 %v2602, 7
  %v2604 = vsub.s32 0, %v2603
  %v2605 = vrot.slane %v2600, %v2604
  %v2607 = vadd.f32 %v2584, %v2605
  %v2608 = vadd.f32 %v2585, %v2605
  %v2609 = vadd.f32 %v2586, %v2605
  %v2610 = vadd.f32 %v2587, %v2605
  %v2611 = vadd.f32 %v2588, %v2605
  %v2612 = vadd.f32 %v2589, %v2605
  %v2613 = vadd.f32 %v2590, %v2605
  %v2614 = vadd.f32 %v2591, %v2605
  %v2615 = vadd.f32 %v2592, %v2605
  %v2616 = vadd.f32 %v2593, %v2605
  %v2617 = vadd.f32 %v2594, %v2605
  %v2618 = vadd.f32 %v2595, %v2605
  %v2619 = vadd.f32 %v2596, %v2605
  %v2620 = vadd.f32 %v2597, %v2605
  %v2621 = vadd.f32 %v2598, %v2605
  %v2622 = vadd.f32 %v2599, %v2605
  %v2623 = vmax.f32 %v2607, 0.0
  %v2624 = vmax.f32 %v2608, 0.0
  %v2625 = vmax.f32 %v2609, 0.0
  %v2626 = vmax.f32 %v2610, 0.0
  %v2627 = vmax.f32 %v2611, 0.0
  %v2628 = vmax.f32 %v2612, 0.0
  %v2629 = vmax.f32 %v2613, 0.0
  %v2630 = vmax.f32 %v2614, 0.0
  %v2631 = vmax.f32 %v2615, 0.0
  %v2632 = vmax.f32 %v2616, 0.0
  %v2633 = vmax.f32 %v2617, 0.0
  %v2634 = vmax.f32 %v2618, 0.0
  %v2635 = vmax.f32 %v2619, 0.0
  %v2636 = vmax.f32 %v2620, 0.0
  %v2637 = vmax.f32 %v2621, 0.0
  %v2638 = vmax.f32 %v2622, 0.0
  %vm2639 = vcmask 261120
  %2640 = vst.msk [vmem:[%s4] sm:$0xff] %vm2639, %v2623
  %2641 = vst.msk [vmem:[%s4 + $0x8] sm:$0xff] %vm2639, %v2624
  %2642 = vst.msk [vmem:[%s4 + $0x10] sm:$0xff] %vm2639, %v2625
  %2643 = vst.msk [vmem:[%s4 + $0x18] sm:$0xff] %vm2639, %v2626
  %2644 = vst.msk [vmem:[%s4 + $0x20] sm:$0xff] %vm2639, %v2627
  %2645 = vst.msk [vmem:[%s4 + $0x28] sm:$0xff] %vm2639, %v2628
  %2646 = vst.msk [vmem:[%s4 + $0x30] sm:$0xff] %vm2639, %v2629
  %2647 = vst.msk [vmem:[%s4 + $0x38] sm:$0xff] %vm2639, %v2630
  %2648 = vst.msk [vmem:[%s4 + $0x40] sm:$0xff] %vm2639, %v2631
  %2649 = vst.msk [vmem:[%s4 + $0x48] sm:$0xff] %vm2639, %v2632
  %2650 = vst.msk [vmem:[%s4 + $0x50] sm:$0xff] %vm2639, %v2633
  %2651 = vst.msk [vmem:[%s4 + $0x58] sm:$0xff] %vm2639, %v2634
  %2652 = vst.msk [vmem:[%s4 + $0x60] sm:$0xff] %vm2639, %v2635
  %2653 = vst.msk [vmem:[%s4 + $0x68] sm:$0xff] %vm2639, %v2636
  %2654 = vst.msk [vmem:[%s4 + $0x70] sm:$0xff] %vm2639, %v2637
  %2655 = vst.msk [vmem:[%s4 + $0x78] sm:$0xff] %vm2639, %v2638
  // Predicated region
  $region18: #{tpu_custom_call.1} parent=0 // pred_check
    _
  $region19: #{tpu_custom_call.1} parent=0 // pred_check_branch
    %2657 = sbr.rel (0) target = $region21
  $region20: #{tpu_custom_call.1} parent=0 // pred_region
    _
  $region21: #{tpu_custom_call.1} parent=0 // pred_fallthru
    _
  // Predicated region
  $region22: #{tpu_custom_call.1} parent=0 // pred_check
    _
  $region23: #{tpu_custom_call.1} parent=0 // pred_check_branch
    %2659 = sbr.rel (0) target = $region25
  $region24: #{tpu_custom_call.1} parent=0 // pred_region
    _
  $region25: #{tpu_custom_call.1} parent=0 // pred_fallthru
    _

</llo_original>
